<compile_context>
chip_gen: v7x
topology: tpu7x:2x2x1
jax: 0.10.0
libtpu: 0.0.40
codegen_flags: <defaults>
</compile_context>

<pallas_src>
import functools

import jax
import jax.numpy as jnp
from jax.experimental import pallas as pl
from jax.experimental.pallas import tpu as pltpu

DP = 128  # lane-padded feature / hidden / class width
_SMEM = pltpu.MemorySpace.SMEM


def _round_up(x, m):
    return (x + m - 1) // m * m


def _vmem_limit_bytes():
    # Derive scoped-VMEM limit from the device (64 MiB physical on v7x,
    # 128 MiB on v5e/v6e); conservative fallback if the query is unavailable.
    try:
        cap = int(pltpu.get_tpu_info().vmem_capacity_bytes)
    except Exception:
        cap = 64 * 1024 * 1024
    return min(int(cap * 0.85), 100 * 1024 * 1024)


def _pad2(w, rows, cols):
    return jnp.pad(w, ((0, rows - w.shape[0]), (0, cols - w.shape[1])))


def _pad_row(b, cols):
    return jnp.pad(b, (0, cols - b.shape[0])).reshape(1, cols)


def _split_hi_lo(x_f32):
    """Two-term bf16 split: x ~= hi + lo with ~2^-16 relative error."""
    hi = x_f32.astype(jnp.bfloat16)
    lo = (x_f32 - hi.astype(jnp.float32)).astype(jnp.bfloat16)
    return hi, lo


# ----------------------------- Pallas kernels ------------------------------


def _gin_conv_kernel(eps_ref, a_ref, xhi_ref, xlo_ref, w1_ref, b1_ref, w2_ref,
                     b2_ref, scale_ref, shift_ref, o_ref, acc_ref, *, tm, tk):
    """One (row-tile, k-tile) step of  MLP((1+eps)*x + A@x)  with BN folded.

    A tile is bf16; x is VMEM-resident as a bf16 hi/lo pair (sliced with
    pl.ds), so both aggregation dots use the fast bf16 MXU path while the
    accumulation stays f32-accurate.
    """
    i = pl.program_id(0)
    k = pl.program_id(1)

    @pl.when(k == 0)
    def _():
        # Initialize the accumulator with the self term (1 + eps) * x_i.
        r0 = pl.multiple_of(i * tm, tm)
        xs = (xhi_ref[pl.ds(r0, tm), :].astype(jnp.float32)
              + xlo_ref[pl.ds(r0, tm), :].astype(jnp.float32))
        acc_ref[...] = (1.0 + eps_ref[0, 0]) * xs

    # Neighbor-sum aggregation partial product (bf16 MXU, f32 accumulation).
    c0 = pl.multiple_of(k * tk, tk)
    a = a_ref[...]
    acc_ref[...] += jnp.dot(a, xhi_ref[pl.ds(c0, tk), :],
                            preferred_element_type=jnp.float32)
    acc_ref[...] += jnp.dot(a, xlo_ref[pl.ds(c0, tk), :],
                            preferred_element_type=jnp.float32)

    @pl.when(k == pl.num_programs(1) - 1)
    def _():
        # MLP: Linear -> ReLU -> Linear -> ReLU, then BatchNorm1d (eval)
        # folded into scale/shift on host; single lane-dense store.
        h = acc_ref[...]
        h = jnp.dot(h, w1_ref[...], preferred_element_type=jnp.float32) + b1_ref[...]
        h = jnp.maximum(h, 0.0)
        h = jnp.dot(h, w2_ref[...], preferred_element_type=jnp.float32) + b2_ref[...]
        h = jnp.maximum(h, 0.0)
        o_ref[...] = h * scale_ref[...] + shift_ref[...]


def _readout_kernel(p_ref, x_ref, w1_ref, b1_ref, w2_ref, b2_ref, o_ref,
                    pooled_ref, *, num_classes):
    """global_mean_pool (blocked over N) -> lin1 -> relu -> lin2 -> log_softmax."""
    k = pl.program_id(0)

    @pl.when(k == 0)
    def _():
        pooled_ref[...] = jnp.zeros_like(pooled_ref)

    pooled_ref[...] += jnp.dot(p_ref[...], x_ref[...],
                               preferred_element_type=jnp.float32)

    @pl.when(k == pl.num_programs(0) - 1)
    def _():
        h = jnp.dot(pooled_ref[...], w1_ref[...],
                    preferred_element_type=jnp.float32) + b1_ref[...]
        h = jnp.maximum(h, 0.0)
        # dropout(p=0.5, training=False) is identity in eval mode
        logits = jnp.dot(h, w2_ref[...],
                         preferred_element_type=jnp.float32) + b2_ref[...]
        # mask the lane padding (classes >= num_classes) before log_softmax
        col = jax.lax.broadcasted_iota(jnp.int32, logits.shape, 1)
        logits = jnp.where(col < num_classes, logits, -1e30)
        m = jnp.max(logits, axis=-1, keepdims=True)
        z = logits - m
        lse = jnp.log(jnp.sum(jnp.exp(z), axis=-1, keepdims=True))
        o_ref[...] = z - lse


# ----------------------------- host wrappers --------------------------------


def gin_conv(x_hi, x_lo, a_bf16, params, *, tm, tk, n_pad_r, bn_eps=1e-5):
    """One GINConv layer: bf16 hi/lo x [n_pad_c, DP] -> f32 [n_pad_r, DP]."""
    n_pad_c = x_hi.shape[0]
    scale = params["bn_gamma"] / jnp.sqrt(params["bn_var"] + bn_eps)
    shift = params["bn_beta"] - params["bn_mean"] * scale
    eps2d = jnp.asarray(params["eps"], jnp.float32).reshape(1, 1)

    w1 = _pad2(params["w1"], DP, DP)
    w2 = _pad2(params["w2"], DP, DP)
    b1 = _pad_row(params["b1"], DP)
    b2 = _pad_row(params["b2"], DP)
    scale = _pad_row(scale, DP)
    shift = _pad_row(shift, DP)

    grid = (n_pad_r // tm, n_pad_c // tk)
    full = lambda i, k: (0, 0)

    return pl.pallas_call(
        functools.partial(_gin_conv_kernel, tm=tm, tk=tk),
        out_shape=jax.ShapeDtypeStruct((n_pad_r, DP), jnp.float32),
        grid_spec=pltpu.PrefetchScalarGridSpec(
            num_scalar_prefetch=0,
            grid=grid,
            in_specs=[
                pl.BlockSpec((1, 1), full, memory_space=_SMEM),   # eps scalar
                pl.BlockSpec((tm, tk), lambda i, k: (i, k)),       # A tile (bf16)
                pl.BlockSpec((n_pad_c, DP), full),                 # x hi (VMEM-resident)
                pl.BlockSpec((n_pad_c, DP), full),                 # x lo (VMEM-resident)
                pl.BlockSpec((DP, DP), full),                      # w1
                pl.BlockSpec((1, DP), full),                       # b1
                pl.BlockSpec((DP, DP), full),                      # w2
                pl.BlockSpec((1, DP), full),                       # b2
                pl.BlockSpec((1, DP), full),                       # bn scale
                pl.BlockSpec((1, DP), full),                       # bn shift
            ],
            out_specs=pl.BlockSpec((tm, DP), lambda i, k: (i, 0)),
            scratch_shapes=[pltpu.VMEM((tm, DP), jnp.float32)],
        ),
        compiler_params=pltpu.CompilerParams(
            dimension_semantics=("parallel", "arbitrary"),
            vmem_limit_bytes=_vmem_limit_bytes(),
        ),
    )(eps2d, a_bf16, x_hi, x_lo, w1, b1, w2, b2, scale, shift)


def readout(x_pad, pool_pad, params, *, tk, num_classes):
    """Pool + MLP head + log_softmax on padded operands -> [b_pad, DP]."""
    n_pad = x_pad.shape[0]
    b_pad = pool_pad.shape[0]
    w1 = _pad2(params["w1"], DP, DP)
    b1 = _pad_row(params["b1"], DP)
    w2 = _pad2(params["w2"], DP, DP)
    b2 = _pad_row(params["b2"], DP)
    full = lambda k: (0, 0)

    return pl.pallas_call(
        functools.partial(_readout_kernel, num_classes=num_classes),
        out_shape=jax.ShapeDtypeStruct((b_pad, DP), jnp.float32),
        grid_spec=pltpu.PrefetchScalarGridSpec(
            num_scalar_prefetch=0,
            grid=(n_pad // tk,),
            in_specs=[
                pl.BlockSpec((b_pad, tk), lambda k: (0, k)),   # P tile (f32)
                pl.BlockSpec((tk, DP), lambda k: (k, 0)),      # x tile
                pl.BlockSpec((DP, DP), full),                  # lin1 w
                pl.BlockSpec((1, DP), full),                   # lin1 b
                pl.BlockSpec((DP, DP), full),                  # lin2 w
                pl.BlockSpec((1, DP), full),                   # lin2 b
            ],
            out_specs=pl.BlockSpec((b_pad, DP), full),
            scratch_shapes=[pltpu.VMEM((b_pad, DP), jnp.float32)],
        ),
        compiler_params=pltpu.CompilerParams(
            dimension_semantics=("arbitrary",),
            vmem_limit_bytes=_vmem_limit_bytes(),
        ),
    )(pool_pad, x_pad, w1, b1, w2, b2)


@functools.partial(jax.jit, static_argnames=("num_classes",))
def gin_forward(x, a, pool_mat, conv_params, head_params, *, num_classes):
    n, f = x.shape
    b = pool_mat.shape[0]
    assert f <= DP and num_classes <= DP

    n128 = _round_up(max(n, 1), 128)
    # Row tile: up to 512 rows (amortizes the MLP epilogue), but keep >= 2 row
    # tiles so the "parallel" grid axis can split across both TensorCores on
    # v7x whenever the graph is big enough.
    tm = 512
    while tm > 128 and n128 < 2 * tm:
        tm //= 2
    n_pad_r = _round_up(n, tm)
    # K tile: long contiguous A-row DMAs, capped at 2048.  n_pad_c is a
    # multiple of tk and >= n_pad_r so the in-kernel self-term slice of the
    # resident x buffer stays in bounds.
    tk = min(2048, n_pad_r)
    n_pad_c = _round_up(n_pad_r, tk)
    b_pad = _round_up(b, 8)

    # Zero-pad nodes / features.  Padded node columns of A and padded pooling
    # weights are zero, so garbage activations on padded rows never leak.
    x_p = jnp.pad(x.astype(jnp.float32), ((0, n_pad_c - n), (0, DP - f)))
    # Adjacency entries are small integer edge counts -> bf16 is exact; halves
    # HBM bytes of the dominant N^2 operand and feeds the MXU's bf16 path.
    a_p = jnp.pad(a, ((0, n_pad_r - n), (0, n_pad_c - n))).astype(jnp.bfloat16)
    pool_p = jnp.pad(pool_mat, ((0, b_pad - b), (0, n_pad_c - n)))

    # TODO(synk): when N^2 bf16 fits VMEM (~4.5-5k nodes on v7x, ~7k on
    # v5e/v6e), fuse all conv layers into one pallas_call with A resident to
    # remove the per-layer A re-stream (needs cross-core coordination to keep
    # the megacore row split).
    # TODO(synk): for realistically sparse graphs replace dense A@x with a
    # CSR-style scalar-prefetch gather aggregation.
    for p in conv_params:
        x_hi, x_lo = _split_hi_lo(x_p)
        y = gin_conv(x_hi, x_lo, a_p, p, tm=tm, tk=tk, n_pad_r=n_pad_r)
        x_p = jnp.pad(y, ((0, n_pad_c - n_pad_r), (0, 0)))

    out = readout(x_p, pool_p, head_params, tk=tk, num_classes=num_classes)
    return out[:b, :num_classes]


# ------------------------- pure-JAX reference --------------------------------


def gin_forward_ref(x, a, pool_mat, conv_params, head_params, bn_eps=1e-5):
    for p in conv_params:
        h = (1.0 + p["eps"]) * x + a @ x
        h = jnp.maximum(h @ p["w1"] + p["b1"], 0.0)
        h = jnp.maximum(h @ p["w2"] + p["b2"], 0.0)
        x = (h - p["bn_mean"]) / jnp.sqrt(p["bn_var"] + bn_eps) * p["bn_gamma"] + p["bn_beta"]
    pooled = pool_mat @ x
    h = jnp.maximum(pooled @ head_params["w1"] + head_params["b1"], 0.0)
    logits = h @ head_params["w2"] + head_params["b2"]
    return jax.nn.log_softmax(logits, axis=-1)


# ----------------------------- parameter setup -------------------------------


def init_linear(key, fan_in, fan_out):
    kw, kb = jax.random.split(key)
    bound = 1.0 / jnp.sqrt(fan_in)
    w = jax.random.uniform(kw, (fan_in, fan_out), jnp.float32, -bound, bound)
    b = jax.random.uniform(kb, (fan_out,), jnp.float32, -bound, bound)
    return w, b


def init_gin_conv(key, fan_in, hidden, layer_idx):
    k1, k2, k3, k4 = jax.random.split(key, 4)
    w1, b1 = init_linear(k1, fan_in, hidden)
    w2, b2 = init_linear(k2, hidden, hidden)
    return {
        "eps": jnp.float32(0.05 * (layer_idx + 1)),   # train_eps=True learnable scalar
        "w1": w1, "b1": b1, "w2": w2, "b2": b2,
        "bn_gamma": 1.0 + 0.1 * jax.random.normal(k3, (hidden,), jnp.float32),
        "bn_beta": 0.1 * jax.random.normal(k4, (hidden,), jnp.float32),
        "bn_mean": jnp.full((hidden,), 0.05, jnp.float32),
        "bn_var": jnp.full((hidden,), 1.2, jnp.float32),
    }


# ----------------------------------- main ------------------------------------

if __name__ == "__main__":
    # Small synthetic "dataset": 2 graphs of 16 nodes each, ring topology.
    NUM_NODES = 32      # total nodes N (2 graphs x 16 nodes)
    NUM_FEATURES = 16   # dataset.num_features
    HIDDEN = 32         # hidden
    NUM_CLASSES = 4     # dataset.num_classes
    NUM_LAYERS = 3      # conv1 + 2 more GINConv layers
    NUM_GRAPHS = 2

    key = jax.random.PRNGKey(0)
    k_x, k_p = jax.random.split(key)

    # Node features [N, F]
    x = jax.random.normal(k_x, (NUM_NODES, NUM_FEATURES), jnp.float32)

    # edge_index [2, E]: bidirectional ring within each graph
    src, dst = [], []
    nodes_per_graph = NUM_NODES // NUM_GRAPHS
    for g in range(NUM_GRAPHS):
        base = g * nodes_per_graph
        for i in range(nodes_per_graph):
            a_n = base + i
            b_n = base + (i + 1) % nodes_per_graph
            src += [a_n, b_n]
            dst += [b_n, a_n]
    edge_index = jnp.array([src, dst], dtype=jnp.int32)

    # batch [N]: graph id per node
    batch = jnp.repeat(jnp.arange(NUM_GRAPHS, dtype=jnp.int32), nodes_per_graph)

    # Dense adjacency A[i, j] = 1 if edge j -> i   (row = target)
    adj = jnp.zeros((NUM_NODES, NUM_NODES), jnp.float32)
    adj = adj.at[edge_index[1], edge_index[0]].add(1.0)

    # Mean-pool matrix P[b, i] = 1/|graph b| if batch[i] == b
    one_hot = (batch[None, :] == jnp.arange(NUM_GRAPHS, dtype=jnp.int32)[:, None]).astype(jnp.float32)
    counts = jnp.sum(one_hot, axis=1, keepdims=True)
    pool_mat = one_hot / counts

    # Deterministic parameters
    keys = jax.random.split(k_p, NUM_LAYERS + 2)
    conv_params = [init_gin_conv(keys[0], NUM_FEATURES, HIDDEN, 0)]
    for l in range(1, NUM_LAYERS):
        conv_params.append(init_gin_conv(keys[l], HIDDEN, HIDDEN, l))
    w_l1, b_l1 = init_linear(keys[NUM_LAYERS], HIDDEN, HIDDEN)
    w_l2, b_l2 = init_linear(keys[NUM_LAYERS + 1], HIDDEN, NUM_CLASSES)
    head_params = {"w1": w_l1, "b1": b_l1, "w2": w_l2, "b2": b_l2}

    out = gin_forward(x, adj, pool_mat, conv_params, head_params,
                      num_classes=NUM_CLASSES)
    out = jax.block_until_ready(out)

    ref = gin_forward_ref(x, adj, pool_mat, conv_params, head_params)
    assert out.shape == (NUM_GRAPHS, NUM_CLASSES)
    assert jnp.allclose(out, ref, atol=1e-4, rtol=1e-4), (out, ref)

    print("KERNEL_OK")
</pallas_src>

<mosaic_0001>
module attributes {stable_mosaic.version = 11 : i64} {
  func.func @_gin_conv_kernel(%arg0: i32, %arg1: i32, %arg2: memref<1x1xf32, #tpu.memory_space<smem>>, %arg3: memref<128x128xbf16, #tpu.memory_space<vmem>>, %arg4: memref<128x128xbf16, #tpu.memory_space<vmem>>, %arg5: memref<128x128xbf16, #tpu.memory_space<vmem>>, %arg6: memref<128x128xf32, #tpu.memory_space<vmem>>, %arg7: memref<1x128xf32, #tpu.memory_space<vmem>>, %arg8: memref<128x128xf32, #tpu.memory_space<vmem>>, %arg9: memref<1x128xf32, #tpu.memory_space<vmem>>, %arg10: memref<1x128xf32, #tpu.memory_space<vmem>>, %arg11: memref<1x128xf32, #tpu.memory_space<vmem>>, %arg12: memref<128x128xf32, #tpu.memory_space<vmem>>, %arg13: memref<128x128xf32, #tpu.memory_space<vmem>>) attributes {dimension_semantics = [#tpu.dimension_semantics<parallel>, #tpu.dimension_semantics<arbitrary>], iteration_bounds = array<i64: 1, 1>, scalar_prefetch = 0 : i64, scratch_operands = 1 : i64, tpu.core_type = #tpu.core_type<tc>, window_params = [{transform_indices = @transform_0, window_bounds = array<i64: 1, 1>}, {transform_indices = @transform_1, window_bounds = array<i64: 128, 128>}, {pipeline_mode = #tpu.pipeline_mode<synchronous>, transform_indices = @transform_2, window_bounds = array<i64: 128, 128>}, {pipeline_mode = #tpu.pipeline_mode<synchronous>, transform_indices = @transform_3, window_bounds = array<i64: 128, 128>}, {pipeline_mode = #tpu.pipeline_mode<synchronous>, transform_indices = @transform_4, window_bounds = array<i64: 128, 128>}, {pipeline_mode = #tpu.pipeline_mode<synchronous>, transform_indices = @transform_5, window_bounds = array<i64: 1, 128>}, {pipeline_mode = #tpu.pipeline_mode<synchronous>, transform_indices = @transform_6, window_bounds = array<i64: 128, 128>}, {pipeline_mode = #tpu.pipeline_mode<synchronous>, transform_indices = @transform_7, window_bounds = array<i64: 1, 128>}, {pipeline_mode = #tpu.pipeline_mode<synchronous>, transform_indices = @transform_8, window_bounds = array<i64: 1, 128>}, {pipeline_mode = #tpu.pipeline_mode<synchronous>, transform_indices = @transform_9, window_bounds = array<i64: 1, 128>}, {transform_indices = @transform_10, window_bounds = array<i64: 128, 128>}]} {
    %c0_i32 = arith.constant 0 : i32
    %0 = arith.cmpi eq, %arg1, %c0_i32 : i32
    %1 = arith.extui %0 : i1 to i32
    %c0_i32_0 = arith.constant 0 : i32
    %2 = arith.cmpi ne, %1, %c0_i32_0 : i32
    scf.if %2 {
      %c128_i32_15 = arith.constant 128 : i32
      %21 = arith.muli %arg0, %c128_i32_15 : i32
      %22 = tpu.assume_multiple %21, 128 : i32
      %23 = arith.index_cast %22 : i32 to index
      %c0_16 = arith.constant 0 : index
      %24 = vector.load %arg4[%23, %c0_16] : memref<128x128xbf16, #tpu.memory_space<vmem>>, vector<128x128xbf16>
      %25 = arith.extf %24 : vector<128x128xbf16> to vector<128x128xf32>
      %26 = arith.index_cast %22 : i32 to index
      %c0_17 = arith.constant 0 : index
      %27 = vector.load %arg5[%26, %c0_17] : memref<128x128xbf16, #tpu.memory_space<vmem>>, vector<128x128xbf16>
      %28 = arith.extf %27 : vector<128x128xbf16> to vector<128x128xf32>
      %29 = arith.addf %25, %28 : vector<128x128xf32>
      %c0_18 = arith.constant 0 : index
      %c0_19 = arith.constant 0 : index
      %30 = memref.load %arg2[%c0_18, %c0_19] : memref<1x1xf32, #tpu.memory_space<smem>>
      %cst_20 = arith.constant 1.000000e+00 : f32
      %31 = arith.addf %cst_20, %30 : f32
      %32 = vector.broadcast %31 : f32 to vector<128x128xf32>
      %33 = arith.mulf %32, %29 : vector<128x128xf32>
      %c0_21 = arith.constant 0 : index
      %c0_22 = arith.constant 0 : index
      %34 = vector.load %arg13[%c0_21, %c0_22] : memref<128x128xf32, #tpu.memory_space<vmem>>, vector<128x128xf32>
      tpu.vector_store %arg13[%c0_21, %c0_22], %33 {strides = array<i32>} : memref<128x128xf32, #tpu.memory_space<vmem>>, vector<128x128xf32>,
    } else {
    }
    %c128_i32 = arith.constant 128 : i32
    %3 = arith.muli %arg1, %c128_i32 : i32
    %4 = tpu.assume_multiple %3, 128 : i32
    %c0 = arith.constant 0 : index
    %c0_1 = arith.constant 0 : index
    %5 = vector.load %arg3[%c0, %c0_1] : memref<128x128xbf16, #tpu.memory_space<vmem>>, vector<128x128xbf16>
    %c0_2 = arith.constant 0 : index
    %c0_3 = arith.constant 0 : index
    %6 = vector.load %arg13[%c0_2, %c0_3] : memref<128x128xf32, #tpu.memory_space<vmem>>, vector<128x128xf32>
    %7 = arith.index_cast %4 : i32 to index
    %c0_4 = arith.constant 0 : index
    %8 = vector.load %arg4[%7, %c0_4] : memref<128x128xbf16, #tpu.memory_space<vmem>>, vector<128x128xbf16>
    %cst = arith.constant dense<0.000000e+00> : vector<128x128xf32>
    %9 = tpu.matmul %5, %8, %cst {dimension_numbers = #tpu.dot_dimension_numbers<[1], [0], [0], [1], [0, 0, 1, 1], [], []>} : vector<128x128xbf16>, vector<128x128xbf16>, vector<128x128xf32> -> vector<128x128xf32>
    %10 = arith.addf %6, %9 : vector<128x128xf32>
    %c0_5 = arith.constant 0 : index
    %c0_6 = arith.constant 0 : index
    %11 = vector.load %arg13[%c0_5, %c0_6] : memref<128x128xf32, #tpu.memory_space<vmem>>, vector<128x128xf32>
    tpu.vector_store %arg13[%c0_5, %c0_6], %10 {strides = array<i32>} : memref<128x128xf32, #tpu.memory_space<vmem>>, vector<128x128xf32>,
    %c0_7 = arith.constant 0 : index
    %c0_8 = arith.constant 0 : index
    %12 = vector.load %arg13[%c0_7, %c0_8] : memref<128x128xf32, #tpu.memory_space<vmem>>, vector<128x128xf32>
    %13 = arith.index_cast %4 : i32 to index
    %c0_9 = arith.constant 0 : index
    %14 = vector.load %arg5[%13, %c0_9] : memref<128x128xbf16, #tpu.memory_space<vmem>>, vector<128x128xbf16>
    %cst_10 = arith.constant dense<0.000000e+00> : vector<128x128xf32>
    %15 = tpu.matmul %5, %14, %cst_10 {dimension_numbers = #tpu.dot_dimension_numbers<[1], [0], [0], [1], [0, 0, 1, 1], [], []>} : vector<128x128xbf16>, vector<128x128xbf16>, vector<128x128xf32> -> vector<128x128xf32>
    %16 = arith.addf %12, %15 : vector<128x128xf32>
    %c0_11 = arith.constant 0 : index
    %c0_12 = arith.constant 0 : index
    %17 = vector.load %arg13[%c0_11, %c0_12] : memref<128x128xf32, #tpu.memory_space<vmem>>, vector<128x128xf32>
    tpu.vector_store %arg13[%c0_11, %c0_12], %16 {strides = array<i32>} : memref<128x128xf32, #tpu.memory_space<vmem>>, vector<128x128xf32>,
    %c0_i32_13 = arith.constant 0 : i32
    %18 = arith.cmpi eq, %arg1, %c0_i32_13 : i32
    %19 = arith.extui %18 : i1 to i32
    %c0_i32_14 = arith.constant 0 : i32
    %20 = arith.cmpi ne, %19, %c0_i32_14 : i32
    scf.if %20 {
      %c0_15 = arith.constant 0 : index
      %c0_16 = arith.constant 0 : index
      %21 = vector.load %arg13[%c0_15, %c0_16] : memref<128x128xf32, #tpu.memory_space<vmem>>, vector<128x128xf32>
      %c0_17 = arith.constant 0 : index
      %c0_18 = arith.constant 0 : index
      %22 = vector.load %arg6[%c0_17, %c0_18] : memref<128x128xf32, #tpu.memory_space<vmem>>, vector<128x128xf32>
      %cst_19 = arith.constant dense<0.000000e+00> : vector<128x128xf32>
      %23 = tpu.matmul %21, %22, %cst_19 {dimension_numbers = #tpu.dot_dimension_numbers<[1], [0], [0], [1], [0, 0, 1, 1], [], []>} : vector<128x128xf32>, vector<128x128xf32>, vector<128x128xf32> -> vector<128x128xf32>
      %c0_20 = arith.constant 0 : index
      %c0_21 = arith.constant 0 : index
      %24 = vector.load %arg7[%c0_20, %c0_21] : memref<1x128xf32, #tpu.memory_space<vmem>>, vector<1x128xf32>
      %25 = vector.broadcast %24 : vector<1x128xf32> to vector<128x128xf32>
      %26 = arith.addf %23, %25 : vector<128x128xf32>
      %cst_22 = arith.constant 0.000000e+00 : f32
      %27 = vector.broadcast %cst_22 : f32 to vector<128x128xf32>
      %28 = arith.maximumf %26, %27 : vector<128x128xf32>
      %c0_23 = arith.constant 0 : index
      %c0_24 = arith.constant 0 : index
      %29 = vector.load %arg8[%c0_23, %c0_24] : memref<128x128xf32, #tpu.memory_space<vmem>>, vector<128x128xf32>
      %cst_25 = arith.constant dense<0.000000e+00> : vector<128x128xf32>
      %30 = tpu.matmul %28, %29, %cst_25 {dimension_numbers = #tpu.dot_dimension_numbers<[1], [0], [0], [1], [0, 0, 1, 1], [], []>} : vector<128x128xf32>, vector<128x128xf32>, vector<128x128xf32> -> vector<128x128xf32>
      %c0_26 = arith.constant 0 : index
      %c0_27 = arith.constant 0 : index
      %31 = vector.load %arg9[%c0_26, %c0_27] : memref<1x128xf32, #tpu.memory_space<vmem>>, vector<1x128xf32>
      %32 = vector.broadcast %31 : vector<1x128xf32> to vector<128x128xf32>
      %33 = arith.addf %30, %32 : vector<128x128xf32>
      %cst_28 = arith.constant 0.000000e+00 : f32
      %34 = vector.broadcast %cst_28 : f32 to vector<128x128xf32>
      %35 = arith.maximumf %33, %34 : vector<128x128xf32>
      %c0_29 = arith.constant 0 : index
      %c0_30 = arith.constant 0 : index
      %36 = vector.load %arg10[%c0_29, %c0_30] : memref<1x128xf32, #tpu.memory_space<vmem>>, vector<1x128xf32>
      %37 = vector.broadcast %36 : vector<1x128xf32> to vector<128x128xf32>
      %38 = arith.mulf %35, %37 : vector<128x128xf32>
      %c0_31 = arith.constant 0 : index
      %c0_32 = arith.constant 0 : index
      %39 = vector.load %arg11[%c0_31, %c0_32] : memref<1x128xf32, #tpu.memory_space<vmem>>, vector<1x128xf32>
      %40 = vector.broadcast %39 : vector<1x128xf32> to vector<128x128xf32>
      %41 = arith.addf %38, %40 : vector<128x128xf32>
      %c0_33 = arith.constant 0 : index
      %c0_34 = arith.constant 0 : index
      %42 = vector.load %arg12[%c0_33, %c0_34] : memref<128x128xf32, #tpu.memory_space<vmem>>, vector<128x128xf32>
      tpu.vector_store %arg12[%c0_33, %c0_34], %41 {strides = array<i32>} : memref<128x128xf32, #tpu.memory_space<vmem>>, vector<128x128xf32>,
    } else {
    }
    return
  }
  func.func @transform_0(%arg0: i32, %arg1: i32) -> (i32, i32) {
    %c0_i32 = arith.constant 0 : i32
    %c0_i32_0 = arith.constant 0 : i32
    %c0_i32_1 = arith.constant 0 : i32
    return %c0_i32, %c0_i32_0 : i32, i32
  }
  func.func @transform_1(%arg0: i32, %arg1: i32) -> (i32, i32) {
    %c0_i32 = arith.constant 0 : i32
    return %arg0, %arg1 : i32, i32
  }
  func.func @transform_2(%arg0: i32, %arg1: i32) -> (i32, i32) {
    %c0_i32 = arith.constant 0 : i32
    %c0_i32_0 = arith.constant 0 : i32
    %c0_i32_1 = arith.constant 0 : i32
    return %c0_i32, %c0_i32_0 : i32, i32
  }
  func.func @transform_3(%arg0: i32, %arg1: i32) -> (i32, i32) {
    %c0_i32 = arith.constant 0 : i32
    %c0_i32_0 = arith.constant 0 : i32
    %c0_i32_1 = arith.constant 0 : i32
    return %c0_i32, %c0_i32_0 : i32, i32
  }
  func.func @transform_4(%arg0: i32, %arg1: i32) -> (i32, i32) {
    %c0_i32 = arith.constant 0 : i32
    %c0_i32_0 = arith.constant 0 : i32
    %c0_i32_1 = arith.constant 0 : i32
    return %c0_i32, %c0_i32_0 : i32, i32
  }
  func.func @transform_5(%arg0: i32, %arg1: i32) -> (i32, i32) {
    %c0_i32 = arith.constant 0 : i32
    %c0_i32_0 = arith.constant 0 : i32
    %c0_i32_1 = arith.constant 0 : i32
    return %c0_i32, %c0_i32_0 : i32, i32
  }
  func.func @transform_6(%arg0: i32, %arg1: i32) -> (i32, i32) {
    %c0_i32 = arith.constant 0 : i32
    %c0_i32_0 = arith.constant 0 : i32
    %c0_i32_1 = arith.constant 0 : i32
    return %c0_i32, %c0_i32_0 : i32, i32
  }
  func.func @transform_7(%arg0: i32, %arg1: i32) -> (i32, i32) {
    %c0_i32 = arith.constant 0 : i32
    %c0_i32_0 = arith.constant 0 : i32
    %c0_i32_1 = arith.constant 0 : i32
    return %c0_i32, %c0_i32_0 : i32, i32
  }
  func.func @transform_8(%arg0: i32, %arg1: i32) -> (i32, i32) {
    %c0_i32 = arith.constant 0 : i32
    %c0_i32_0 = arith.constant 0 : i32
    %c0_i32_1 = arith.constant 0 : i32
    return %c0_i32, %c0_i32_0 : i32, i32
  }
  func.func @transform_9(%arg0: i32, %arg1: i32) -> (i32, i32) {
    %c0_i32 = arith.constant 0 : i32
    %c0_i32_0 = arith.constant 0 : i32
    %c0_i32_1 = arith.constant 0 : i32
    return %c0_i32, %c0_i32_0 : i32, i32
  }
  func.func @transform_10(%arg0: i32, %arg1: i32) -> (i32, i32) {
    %c0_i32 = arith.constant 0 : i32
    %c0_i32_0 = arith.constant 0 : i32
    return %arg0, %c0_i32 : i32, i32
  }
}

module attributes {stable_mosaic.version = 11 : i64} {
  func.func @_readout_kernel(%arg0: i32, %arg1: memref<8x128xf32, #tpu.memory_space<vmem>>, %arg2: memref<128x128xf32, #tpu.memory_space<vmem>>, %arg3: memref<128x128xf32, #tpu.memory_space<vmem>>, %arg4: memref<1x128xf32, #tpu.memory_space<vmem>>, %arg5: memref<128x128xf32, #tpu.memory_space<vmem>>, %arg6: memref<1x128xf32, #tpu.memory_space<vmem>>, %arg7: memref<8x128xf32, #tpu.memory_space<vmem>>, %arg8: memref<8x128xf32, #tpu.memory_space<vmem>>) attributes {dimension_semantics = [#tpu.dimension_semantics<arbitrary>], iteration_bounds = array<i64: 1>, scalar_prefetch = 0 : i64, scratch_operands = 1 : i64, tpu.core_type = #tpu.core_type<tc>, window_params = [{transform_indices = @transform_0, window_bounds = array<i64: 8, 128>}, {transform_indices = @transform_1, window_bounds = array<i64: 128, 128>}, {pipeline_mode = #tpu.pipeline_mode<synchronous>, transform_indices = @transform_2, window_bounds = array<i64: 128, 128>}, {pipeline_mode = #tpu.pipeline_mode<synchronous>, transform_indices = @transform_3, window_bounds = array<i64: 1, 128>}, {pipeline_mode = #tpu.pipeline_mode<synchronous>, transform_indices = @transform_4, window_bounds = array<i64: 128, 128>}, {pipeline_mode = #tpu.pipeline_mode<synchronous>, transform_indices = @transform_5, window_bounds = array<i64: 1, 128>}, {pipeline_mode = #tpu.pipeline_mode<synchronous>, transform_indices = @transform_6, window_bounds = array<i64: 8, 128>}]} {
    %c0_i32 = arith.constant 0 : i32
    %0 = arith.cmpi eq, %arg0, %c0_i32 : i32
    %1 = arith.extui %0 : i1 to i32
    %c0_i32_0 = arith.constant 0 : i32
    %2 = arith.cmpi ne, %1, %c0_i32_0 : i32
    scf.if %2 {
      %cst_10 = arith.constant 0.000000e+00 : f32
      %12 = vector.broadcast %cst_10 : f32 to vector<8x128xf32>
      %c0_11 = arith.constant 0 : index
      %c0_12 = arith.constant 0 : index
      %13 = vector.load %arg8[%c0_11, %c0_12] : memref<8x128xf32, #tpu.memory_space<vmem>>, vector<8x128xf32>
      tpu.vector_store %arg8[%c0_11, %c0_12], %12 {strides = array<i32>} : memref<8x128xf32, #tpu.memory_space<vmem>>, vector<8x128xf32>,
    } else {
    }
    %c0 = arith.constant 0 : index
    %c0_1 = arith.constant 0 : index
    %3 = vector.load %arg8[%c0, %c0_1] : memref<8x128xf32, #tpu.memory_space<vmem>>, vector<8x128xf32>
    %c0_2 = arith.constant 0 : index
    %c0_3 = arith.constant 0 : index
    %4 = vector.load %arg1[%c0_2, %c0_3] : memref<8x128xf32, #tpu.memory_space<vmem>>, vector<8x128xf32>
    %c0_4 = arith.constant 0 : index
    %c0_5 = arith.constant 0 : index
    %5 = vector.load %arg2[%c0_4, %c0_5] : memref<128x128xf32, #tpu.memory_space<vmem>>, vector<128x128xf32>
    %cst = arith.constant dense<0.000000e+00> : vector<8x128xf32>
    %6 = tpu.matmul %4, %5, %cst {dimension_numbers = #tpu.dot_dimension_numbers<[1], [0], [0], [1], [0, 0, 1, 1], [], []>} : vector<8x128xf32>, vector<128x128xf32>, vector<8x128xf32> -> vector<8x128xf32>
    %7 = arith.addf %3, %6 : vector<8x128xf32>
    %c0_6 = arith.constant 0 : index
    %c0_7 = arith.constant 0 : index
    %8 = vector.load %arg8[%c0_6, %c0_7] : memref<8x128xf32, #tpu.memory_space<vmem>>, vector<8x128xf32>
    tpu.vector_store %arg8[%c0_6, %c0_7], %7 {strides = array<i32>} : memref<8x128xf32, #tpu.memory_space<vmem>>, vector<8x128xf32>,
    %c0_i32_8 = arith.constant 0 : i32
    %9 = arith.cmpi eq, %arg0, %c0_i32_8 : i32
    %10 = arith.extui %9 : i1 to i32
    %c0_i32_9 = arith.constant 0 : i32
    %11 = arith.cmpi ne, %10, %c0_i32_9 : i32
    scf.if %11 {
      %c0_10 = arith.constant 0 : index
      %c0_11 = arith.constant 0 : index
      %12 = vector.load %arg8[%c0_10, %c0_11] : memref<8x128xf32, #tpu.memory_space<vmem>>, vector<8x128xf32>
      %c0_12 = arith.constant 0 : index
      %c0_13 = arith.constant 0 : index
      %13 = vector.load %arg3[%c0_12, %c0_13] : memref<128x128xf32, #tpu.memory_space<vmem>>, vector<128x128xf32>
      %cst_14 = arith.constant dense<0.000000e+00> : vector<8x128xf32>
      %14 = tpu.matmul %12, %13, %cst_14 {dimension_numbers = #tpu.dot_dimension_numbers<[1], [0], [0], [1], [0, 0, 1, 1], [], []>} : vector<8x128xf32>, vector<128x128xf32>, vector<8x128xf32> -> vector<8x128xf32>
      %c0_15 = arith.constant 0 : index
      %c0_16 = arith.constant 0 : index
      %15 = vector.load %arg4[%c0_15, %c0_16] : memref<1x128xf32, #tpu.memory_space<vmem>>, vector<1x128xf32>
      %16 = vector.broadcast %15 : vector<1x128xf32> to vector<8x128xf32>
      %17 = arith.addf %14, %16 : vector<8x128xf32>
      %cst_17 = arith.constant 0.000000e+00 : f32
      %18 = vector.broadcast %cst_17 : f32 to vector<8x128xf32>
      %19 = arith.maximumf %17, %18 : vector<8x128xf32>
      %c0_18 = arith.constant 0 : index
      %c0_19 = arith.constant 0 : index
      %20 = vector.load %arg5[%c0_18, %c0_19] : memref<128x128xf32, #tpu.memory_space<vmem>>, vector<128x128xf32>
      %cst_20 = arith.constant dense<0.000000e+00> : vector<8x128xf32>
      %21 = tpu.matmul %19, %20, %cst_20 {dimension_numbers = #tpu.dot_dimension_numbers<[1], [0], [0], [1], [0, 0, 1, 1], [], []>} : vector<8x128xf32>, vector<128x128xf32>, vector<8x128xf32> -> vector<8x128xf32>
      %c0_21 = arith.constant 0 : index
      %c0_22 = arith.constant 0 : index
      %22 = vector.load %arg6[%c0_21, %c0_22] : memref<1x128xf32, #tpu.memory_space<vmem>>, vector<1x128xf32>
      %23 = vector.broadcast %22 : vector<1x128xf32> to vector<8x128xf32>
      %24 = arith.addf %21, %23 : vector<8x128xf32>
      %25 = tpu.iota {dimensions = array<i32: 1>} : vector<8x128xi32>
      %c4_i32 = arith.constant 4 : i32
      %26 = vector.broadcast %c4_i32 : i32 to vector<8x128xi32>
      %27 = arith.cmpi slt, %25, %26 : vector<8x128xi32>
      %cst_23 = arith.constant -1.000000e+30 : f32
      %28 = vector.broadcast %cst_23 : f32 to vector<8x128xf32>
      %29 = arith.select %27, %24, %28 : vector<8x128xi1>, vector<8x128xf32>
      %cst_24 = arith.constant dense<0xFF800000> : vector<8xf32>
      %30 = vector.multi_reduction <maximumf>, %29, %cst_24 [1] : vector<8x128xf32> to vector<8xf32>
      %31 = vector.shape_cast %30 : vector<8xf32> to vector<8x1xf32>
      %32 = vector.broadcast %31 : vector<8x1xf32> to vector<8x128xf32>
      %33 = arith.subf %29, %32 : vector<8x128xf32>
      %34 = math.exp %33 : vector<8x128xf32>
      %cst_25 = arith.constant dense<0.000000e+00> : vector<8xf32>
      %35 = vector.multi_reduction <add>, %34, %cst_25 [1] : vector<8x128xf32> to vector<8xf32>
      %36 = vector.shape_cast %35 : vector<8xf32> to vector<8x1xf32>
      %37 = math.log %36 : vector<8x1xf32>
      %38 = vector.broadcast %37 : vector<8x1xf32> to vector<8x128xf32>
      %39 = arith.subf %33, %38 : vector<8x128xf32>
      %c0_26 = arith.constant 0 : index
      %c0_27 = arith.constant 0 : index
      %40 = vector.load %arg7[%c0_26, %c0_27] : memref<8x128xf32, #tpu.memory_space<vmem>>, vector<8x128xf32>
      tpu.vector_store %arg7[%c0_26, %c0_27], %39 {strides = array<i32>} : memref<8x128xf32, #tpu.memory_space<vmem>>, vector<8x128xf32>,
    } else {
    }
    return
  }
  func.func @transform_0(%arg0: i32) -> (i32, i32) {
    %c0_i32 = arith.constant 0 : i32
    %c0_i32_0 = arith.constant 0 : i32
    return %c0_i32, %arg0 : i32, i32
  }
  func.func @transform_1(%arg0: i32) -> (i32, i32) {
    %c0_i32 = arith.constant 0 : i32
    %c0_i32_0 = arith.constant 0 : i32
    return %arg0, %c0_i32 : i32, i32
  }
  func.func @transform_2(%arg0: i32) -> (i32, i32) {
    %c0_i32 = arith.constant 0 : i32
    %c0_i32_0 = arith.constant 0 : i32
    %c0_i32_1 = arith.constant 0 : i32
    return %c0_i32, %c0_i32_0 : i32, i32
  }
  func.func @transform_3(%arg0: i32) -> (i32, i32) {
    %c0_i32 = arith.constant 0 : i32
    %c0_i32_0 = arith.constant 0 : i32
    %c0_i32_1 = arith.constant 0 : i32
    return %c0_i32, %c0_i32_0 : i32, i32
  }
  func.func @transform_4(%arg0: i32) -> (i32, i32) {
    %c0_i32 = arith.constant 0 : i32
    %c0_i32_0 = arith.constant 0 : i32
    %c0_i32_1 = arith.constant 0 : i32
    return %c0_i32, %c0_i32_0 : i32, i32
  }
  func.func @transform_5(%arg0: i32) -> (i32, i32) {
    %c0_i32 = arith.constant 0 : i32
    %c0_i32_0 = arith.constant 0 : i32
    %c0_i32_1 = arith.constant 0 : i32
    return %c0_i32, %c0_i32_0 : i32, i32
  }
  func.func @transform_6(%arg0: i32) -> (i32, i32) {
    %c0_i32 = arith.constant 0 : i32
    %c0_i32_0 = arith.constant 0 : i32
    %c0_i32_1 = arith.constant 0 : i32
    return %c0_i32, %c0_i32_0 : i32, i32
  }
}

</mosaic_0001>

<llo_original>
// kernel: gin_forward.7
$region0: #{gin_forward.7}
  #allocation0 [shape = 'u32[]', space=smem, size = 0x4, offset = 0x4, fixed_abs, tag = 'smem constant byte address 0x4 - core index']
  #allocation1 [shape = 'u32[144,128]{1,0:T(1,128)}', space=vmem, size = 0x12000, scoped, tag = 'internal scratch']
  #allocation2 [shape = 'f32[8,128]{1,0:T(8,128)}', space=vmem, size = 0x1000, scoped, tag = 'scratch operand']
  %s0 = inlined_call_operand.vmem [shape: f32[8,128], index: 0, kind: input, shape index: {}]
  %s1 = inlined_call_operand.vmem [shape: f32[128,128], index: 1, kind: input, shape index: {}]
  %s2 = inlined_call_operand.vmem [shape: f32[128,128], index: 2, kind: input, shape index: {}]
  %s3 = inlined_call_operand.vmem [shape: f32[1,128], index: 3, kind: input, shape index: {}]
  %s4 = inlined_call_operand.vmem [shape: f32[128,128], index: 4, kind: input, shape index: {}]
  %s5 = inlined_call_operand.vmem [shape: f32[1,128], index: 5, kind: input, shape index: {}]
  %s6 = inlined_call_operand.vmem [shape: f32[8,128], index: 6, kind: output, shape index: {}]
  %s7 = sld [smem:[#allocation0]]
  $region42: #{gin_forward.7} parent=0
    _
  %s9 = ssub.s32 1, %s7
  %s10 = scalar_select 0, %s9, %s7
  // Predicated region
  $region2: #{gin_forward.7} parent=0 // pred_check
    _
  $region3: #{gin_forward.7} parent=0 // pred_check_branch
    %12 = sbr.rel (0) target = $region5
  $region4: #{gin_forward.7} parent=0 // pred_region
    _
  $region5: #{gin_forward.7} parent=0 // pred_fallthru
    _
  // Predicated region
  $region6: #{gin_forward.7} parent=0 // pred_check
    _
  $region7: #{gin_forward.7} parent=0 // pred_check_branch
    %14 = sbr.rel (0) target = $region9
  $region8: #{gin_forward.7} parent=0 // pred_region
    _
  $region9: #{gin_forward.7} parent=0 // pred_fallthru
    _
  // Predicated region
  $region10: #{gin_forward.7} parent=0 // pred_check
    _
  $region11: #{gin_forward.7} parent=0 // pred_check_branch
    %16 = sbr.rel (0) target = $region13
  $region12: #{gin_forward.7} parent=0 // pred_region
    _
  $region13: #{gin_forward.7} parent=0 // pred_fallthru
    _
  // Predicated region
  $region14: #{gin_forward.7} parent=0 // pred_check
    _
  $region15: #{gin_forward.7} parent=0 // pred_check_branch
    %18 = sbr.rel (0) target = $region17
  $region16: #{gin_forward.7} parent=0 // pred_region
    _
  $region17: #{gin_forward.7} parent=0 // pred_fallthru
    _
  // Predicated region
  $region18: #{gin_forward.7} parent=0 // pred_check
    _
  $region19: #{gin_forward.7} parent=0 // pred_check_branch
    %20 = sbr.rel (0) target = $region21
  $region20: #{gin_forward.7} parent=0 // pred_region
    _
  $region21: #{gin_forward.7} parent=0 // pred_fallthru
    _
  // Predicated region
  $region22: #{gin_forward.7} parent=0 // pred_check
    _
  $region23: #{gin_forward.7} parent=0 // pred_check_branch
    %22 = sbr.rel (0) target = $region25
  $region24: #{gin_forward.7} parent=0 // pred_region
    _
  $region25: #{gin_forward.7} parent=0 // pred_fallthru
    _
  %p23 = scmp.eq.s32.totalorder 0, 0
  // Predicated region
  $region26: #{gin_forward.7} parent=0 // pred_check
    %p24 = pneg %p23
  $region27: #{gin_forward.7} parent=0 // pred_check_branch
    %26 = sbr.rel (%p24) target = $region29
  $region28: #{gin_forward.7} parent=0 // pred_region
    %27 = vst [vmem:[#allocation2] sm:$0xff] 0.0
  $region29: #{gin_forward.7} parent=0 // pred_fallthru
    _
  %v28 = vld [vmem:[#allocation2] sm:$0xff]
  %v29 = vld [vmem:[%s0] sm:$0xff]
  %v30 = vld [vmem:[%s1] sm:$0xff]
  %v31 = vld [vmem:[%s1 + $0x8] sm:$0xff]
  %v32 = vld [vmem:[%s1 + $0x10] sm:$0xff]
  %v33 = vld [vmem:[%s1 + $0x18] sm:$0xff]
  %v34 = vld [vmem:[%s1 + $0x20] sm:$0xff]
  %v35 = vld [vmem:[%s1 + $0x28] sm:$0xff]
  %v36 = vld [vmem:[%s1 + $0x30] sm:$0xff]
  %v37 = vld [vmem:[%s1 + $0x38] sm:$0xff]
  %v38 = vld [vmem:[%s1 + $0x40] sm:$0xff]
  %v39 = vld [vmem:[%s1 + $0x48] sm:$0xff]
  %v40 = vld [vmem:[%s1 + $0x50] sm:$0xff]
  %v41 = vld [vmem:[%s1 + $0x58] sm:$0xff]
  %v42 = vld [vmem:[%s1 + $0x60] sm:$0xff]
  %v43 = vld [vmem:[%s1 + $0x68] sm:$0xff]
  %v44 = vld [vmem:[%s1 + $0x70] sm:$0xff]
  %v45 = vld [vmem:[%s1 + $0x78] sm:$0xff]
  %46 = vmatprep.subr.mxu0 0.0
  %47 = vmatpush1.msra.mxu0 %v30
  %48 = vmatprep.subr.mxu0 0.0
  %49 = vmatpush1.msra.mxu0 %v31
  %50 = vmatprep.subr.mxu0 0.0
  %51 = vmatpush1.msra.mxu0 %v32
  %52 = vmatprep.subr.mxu0 0.0
  %53 = vmatpush1.msra.mxu0 %v33
  %54 = vmatprep.subr.mxu0 0.0
  %55 = vmatpush1.msra.mxu0 %v34
  %56 = vmatprep.subr.mxu0 0.0
  %57 = vmatpush1.msra.mxu0 %v35
  %58 = vmatprep.subr.mxu0 0.0
  %59 = vmatpush1.msra.mxu0 %v36
  %60 = vmatprep.subr.mxu0 0.0
  %61 = vmatpush1.msra.mxu0 %v37
  %62 = vmatprep.subr.mxu0 0.0
  %63 = vmatpush1.msra.mxu0 %v38
  %64 = vmatprep.subr.mxu0 0.0
  %65 = vmatpush1.msra.mxu0 %v39
  %66 = vmatprep.subr.mxu0 0.0
  %67 = vmatpush1.msra.mxu0 %v40
  %68 = vmatprep.subr.mxu0 0.0
  %69 = vmatpush1.msra.mxu0 %v41
  %70 = vmatprep.subr.mxu0 0.0
  %71 = vmatpush1.msra.mxu0 %v42
  %72 = vmatprep.subr.mxu0 0.0
  %73 = vmatpush1.msra.mxu0 %v43
  %74 = vmatprep.subr.mxu0 0.0
  %75 = vmatpush1.msra.mxu0 %v44
  %76 = vmatprep.subr.mxu0 0.0
  %77 = vmatpush1.msra.mxu0 %v45
  %78 = vmatprep.subr.mxu0 0.0
  %79 = vmatpush1.msra.mxu0 0.0
  %80 = vmatprep.subr.mxu0 0.0
  %81 = vmatpush1.msra.mxu0 0.0
  %82 = vmatprep.subr.mxu0 0.0
  %83 = vmatpush1.msra.mxu0 0.0
  %84 = vmatprep.subr.mxu0 0.0
  %85 = vmatpush1.msra.mxu0 0.0
  %86 = vmatprep.subr.mxu0 0.0
  %87 = vmatpush1.msra.mxu0 0.0
  %88 = vmatprep.subr.mxu0 0.0
  %89 = vmatpush1.msra.mxu0 0.0
  %90 = vmatprep.subr.mxu0 0.0
  %91 = vmatpush1.msra.mxu0 0.0
  %92 = vmatprep.subr.mxu0 0.0
  %93 = vmatpush1.msra.mxu0 0.0
  %94 = vmatprep.subr.mxu0 0.0
  %95 = vmatpush1.msra.mxu0 0.0
  %96 = vmatprep.subr.mxu0 0.0
  %97 = vmatpush1.msra.mxu0 0.0
  %98 = vmatprep.subr.mxu0 0.0
  %99 = vmatpush1.msra.mxu0 0.0
  %100 = vmatprep.subr.mxu0 0.0
  %101 = vmatpush1.msra.mxu0 0.0
  %102 = vmatprep.subr.mxu0 0.0
  %103 = vmatpush1.msra.mxu0 0.0
  %104 = vmatprep.subr.mxu0 0.0
  %105 = vmatpush1.msra.mxu0 0.0
  %106 = vmatprep.subr.mxu0 0.0
  %107 = vmatpush1.msra.mxu0 0.0
  %108 = vmatprep.subr.mxu0 0.0
  %109 = vmatpush1.msra.mxu0 0.0
  %110 = vmatprep.mubr.f32.mxu0 0.0
  %111 = vmatmul.mubr.f32.gmra.mrb[0].mxu0 %v29
  %v112 = vpop.f32.mrb[0].mxu0
  %v113 = vadd.f32 0.0, %v112
  %v114 = vpop.f32.mrb[0].mxu0
  %115 = vdwg.mxu0
  %v116 = vadd.f32 %v28, %v113
  %117 = vst [vmem:[#allocation2] sm:$0xff] %v116
  // Predicated region
  $region30: #{gin_forward.7} parent=0 // pred_check
    %p118 = pneg %p23
  $region31: #{gin_forward.7} parent=0 // pred_check_branch
    %120 = sbr.rel (%p118) target = $region33
  $region32: #{gin_forward.7} parent=0 // pred_region
    %v121 = vld [vmem:[#allocation2] sm:$0xff]
    %v122 = vld [vmem:[%s2] sm:$0xff]
    %v123 = vld [vmem:[%s2 + $0x8] sm:$0xff]
    %v124 = vld [vmem:[%s2 + $0x10] sm:$0xff]
    %v125 = vld [vmem:[%s2 + $0x18] sm:$0xff]
    %v126 = vld [vmem:[%s2 + $0x20] sm:$0xff]
    %v127 = vld [vmem:[%s2 + $0x28] sm:$0xff]
    %v128 = vld [vmem:[%s2 + $0x30] sm:$0xff]
    %v129 = vld [vmem:[%s2 + $0x38] sm:$0xff]
    %v130 = vld [vmem:[%s2 + $0x40] sm:$0xff]
    %v131 = vld [vmem:[%s2 + $0x48] sm:$0xff]
    %v132 = vld [vmem:[%s2 + $0x50] sm:$0xff]
    %v133 = vld [vmem:[%s2 + $0x58] sm:$0xff]
    %v134 = vld [vmem:[%s2 + $0x60] sm:$0xff]
    %v135 = vld [vmem:[%s2 + $0x68] sm:$0xff]
    %v136 = vld [vmem:[%s2 + $0x70] sm:$0xff]
    %v137 = vld [vmem:[%s2 + $0x78] sm:$0xff]
    %v138 = vld [vmem:[%s3] sm:$0x1]
    %v140 = vlaneseq
    %v141 = vshrl.u32 %v140, 7
    %v142 = vsub.s32 0, %v141
    %v143 = vrot.slane %v138, %v142
    %145 = vmatprep.subr.mxu0 0.0
    %146 = vmatpush1.msra.mxu0 %v122
    %147 = vmatprep.subr.mxu0 0.0
    %148 = vmatpush1.msra.mxu0 %v123
    %149 = vmatprep.subr.mxu0 0.0
    %150 = vmatpush1.msra.mxu0 %v124
    %151 = vmatprep.subr.mxu0 0.0
    %152 = vmatpush1.msra.mxu0 %v125
    %153 = vmatprep.subr.mxu0 0.0
    %154 = vmatpush1.msra.mxu0 %v126
    %155 = vmatprep.subr.mxu0 0.0
    %156 = vmatpush1.msra.mxu0 %v127
    %157 = vmatprep.subr.mxu0 0.0
    %158 = vmatpush1.msra.mxu0 %v128
    %159 = vmatprep.subr.mxu0 0.0
    %160 = vmatpush1.msra.mxu0 %v129
    %161 = vmatprep.subr.mxu0 0.0
    %162 = vmatpush1.msra.mxu0 %v130
    %163 = vmatprep.subr.mxu0 0.0
    %164 = vmatpush1.msra.mxu0 %v131
    %165 = vmatprep.subr.mxu0 0.0
    %166 = vmatpush1.msra.mxu0 %v132
    %167 = vmatprep.subr.mxu0 0.0
    %168 = vmatpush1.msra.mxu0 %v133
    %169 = vmatprep.subr.mxu0 0.0
    %170 = vmatpush1.msra.mxu0 %v134
    %171 = vmatprep.subr.mxu0 0.0
    %172 = vmatpush1.msra.mxu0 %v135
    %173 = vmatprep.subr.mxu0 0.0
    %174 = vmatpush1.msra.mxu0 %v136
    %175 = vmatprep.subr.mxu0 0.0
    %176 = vmatpush1.msra.mxu0 %v137
    %177 = vmatprep.subr.mxu0 0.0
    %178 = vmatpush1.msra.mxu0 0.0
    %179 = vmatprep.subr.mxu0 0.0
    %180 = vmatpush1.msra.mxu0 0.0
    %181 = vmatprep.subr.mxu0 0.0
    %182 = vmatpush1.msra.mxu0 0.0
    %183 = vmatprep.subr.mxu0 0.0
    %184 = vmatpush1.msra.mxu0 0.0
    %185 = vmatprep.subr.mxu0 0.0
    %186 = vmatpush1.msra.mxu0 0.0
    %187 = vmatprep.subr.mxu0 0.0
    %188 = vmatpush1.msra.mxu0 0.0
    %189 = vmatprep.subr.mxu0 0.0
    %190 = vmatpush1.msra.mxu0 0.0
    %191 = vmatprep.subr.mxu0 0.0
    %192 = vmatpush1.msra.mxu0 0.0
    %193 = vmatprep.subr.mxu0 0.0
    %194 = vmatpush1.msra.mxu0 0.0
    %195 = vmatprep.subr.mxu0 0.0
    %196 = vmatpush1.msra.mxu0 0.0
    %197 = vmatprep.subr.mxu0 0.0
    %198 = vmatpush1.msra.mxu0 0.0
    %199 = vmatprep.subr.mxu0 0.0
    %200 = vmatpush1.msra.mxu0 0.0
    %201 = vmatprep.subr.mxu0 0.0
    %202 = vmatpush1.msra.mxu0 0.0
    %203 = vmatprep.subr.mxu0 0.0
    %204 = vmatpush1.msra.mxu0 0.0
    %205 = vmatprep.subr.mxu0 0.0
    %206 = vmatpush1.msra.mxu0 0.0
    %207 = vmatprep.subr.mxu0 0.0
    %208 = vmatpush1.msra.mxu0 0.0
    %209 = vmatprep.mubr.f32.mxu0 0.0
    %210 = vmatmul.mubr.f32.gmra.mrb[0].mxu0 %v121
    %v211 = vpop.f32.mrb[0].mxu0
    %v212 = vadd.f32 %v143, %v211
    %v213 = vpop.f32.mrb[0].mxu0
    %214 = vdwg.mxu0
    %v215 = vmax.f32 %v212, 0.0
    %v216 = vld [vmem:[%s4] sm:$0xff]
    %v217 = vld [vmem:[%s4 + $0x8] sm:$0xff]
    %v218 = vld [vmem:[%s4 + $0x10] sm:$0xff]
    %v219 = vld [vmem:[%s4 + $0x18] sm:$0xff]
    %v220 = vld [vmem:[%s4 + $0x20] sm:$0xff]
    %v221 = vld [vmem:[%s4 + $0x28] sm:$0xff]
    %v222 = vld [vmem:[%s4 + $0x30] sm:$0xff]
    %v223 = vld [vmem:[%s4 + $0x38] sm:$0xff]
    %v224 = vld [vmem:[%s4 + $0x40] sm:$0xff]
    %v225 = vld [vmem:[%s4 + $0x48] sm:$0xff]
    %v226 = vld [vmem:[%s4 + $0x50] sm:$0xff]
    %v227 = vld [vmem:[%s4 + $0x58] sm:$0xff]
    %v228 = vld [vmem:[%s4 + $0x60] sm:$0xff]
    %v229 = vld [vmem:[%s4 + $0x68] sm:$0xff]
    %v230 = vld [vmem:[%s4 + $0x70] sm:$0xff]
    %v231 = vld [vmem:[%s4 + $0x78] sm:$0xff]
    %v232 = vld [vmem:[%s5] sm:$0x1]
    %v234 = vlaneseq
    %v235 = vshrl.u32 %v234, 7
    %v236 = vsub.s32 0, %v235
    %v237 = vrot.slane %v232, %v236
    %239 = vmatprep.subr.mxu0 0.0
    %240 = vmatpush1.msra.mxu0 %v216
    %241 = vmatprep.subr.mxu0 0.0
    %242 = vmatpush1.msra.mxu0 %v217
    %243 = vmatprep.subr.mxu0 0.0
    %244 = vmatpush1.msra.mxu0 %v218
    %245 = vmatprep.subr.mxu0 0.0
    %246 = vmatpush1.msra.mxu0 %v219
    %247 = vmatprep.subr.mxu0 0.0
    %248 = vmatpush1.msra.mxu0 %v220
    %249 = vmatprep.subr.mxu0 0.0
    %250 = vmatpush1.msra.mxu0 %v221
    %251 = vmatprep.subr.mxu0 0.0
    %252 = vmatpush1.msra.mxu0 %v222
    %253 = vmatprep.subr.mxu0 0.0
    %254 = vmatpush1.msra.mxu0 %v223
    %255 = vmatprep.subr.mxu0 0.0
    %256 = vmatpush1.msra.mxu0 %v224
    %257 = vmatprep.subr.mxu0 0.0
    %258 = vmatpush1.msra.mxu0 %v225
    %259 = vmatprep.subr.mxu0 0.0
    %260 = vmatpush1.msra.mxu0 %v226
    %261 = vmatprep.subr.mxu0 0.0
    %262 = vmatpush1.msra.mxu0 %v227
    %263 = vmatprep.subr.mxu0 0.0
    %264 = vmatpush1.msra.mxu0 %v228
    %265 = vmatprep.subr.mxu0 0.0
    %266 = vmatpush1.msra.mxu0 %v229
    %267 = vmatprep.subr.mxu0 0.0
    %268 = vmatpush1.msra.mxu0 %v230
    %269 = vmatprep.subr.mxu0 0.0
    %270 = vmatpush1.msra.mxu0 %v231
    %271 = vmatprep.subr.mxu0 0.0
    %272 = vmatpush1.msra.mxu0 0.0
    %273 = vmatprep.subr.mxu0 0.0
    %274 = vmatpush1.msra.mxu0 0.0
    %275 = vmatprep.subr.mxu0 0.0
    %276 = vmatpush1.msra.mxu0 0.0
    %277 = vmatprep.subr.mxu0 0.0
    %278 = vmatpush1.msra.mxu0 0.0
    %279 = vmatprep.subr.mxu0 0.0
    %280 = vmatpush1.msra.mxu0 0.0
    %281 = vmatprep.subr.mxu0 0.0
    %282 = vmatpush1.msra.mxu0 0.0
    %283 = vmatprep.subr.mxu0 0.0
    %284 = vmatpush1.msra.mxu0 0.0
    %285 = vmatprep.subr.mxu0 0.0
    %286 = vmatpush1.msra.mxu0 0.0
    %287 = vmatprep.subr.mxu0 0.0
    %288 = vmatpush1.msra.mxu0 0.0
    %289 = vmatprep.subr.mxu0 0.0
    %290 = vmatpush1.msra.mxu0 0.0
    %291 = vmatprep.subr.mxu0 0.0
    %292 = vmatpush1.msra.mxu0 0.0
    %293 = vmatprep.subr.mxu0 0.0
    %294 = vmatpush1.msra.mxu0 0.0
    %295 = vmatprep.subr.mxu0 0.0
    %296 = vmatpush1.msra.mxu0 0.0
    %297 = vmatprep.subr.mxu0 0.0
    %298 = vmatpush1.msra.mxu0 0.0
    %299 = vmatprep.subr.mxu0 0.0
    %300 = vmatpush1.msra.mxu0 0.0
    %301 = vmatprep.subr.mxu0 0.0
    %302 = vmatpush1.msra.mxu0 0.0
    %303 = vmatprep.mubr.f32.mxu0 0.0
    %304 = vmatmul.mubr.f32.gmra.mrb[0].mxu0 %v215
    %v305 = vpop.f32.mrb[0].mxu0
    %v306 = vadd.f32 %v237, %v305
    %v307 = vpop.f32.mrb[0].mxu0
    %308 = vdwg.mxu0
    %v309 = vlaneseq
    %v310 = vand.u32 %v309, 127
    %vm311 = vcmp.lt.s32.totalorder %v310, 4
    %v312 = vsel %vm311, %v306, -1e+30
    %313 = vmax.xlane.f32.xlu0 %v312
    %v314 = vpop.xlane.xlu0 %313
    %v315 = vsub.f32 %v312, %v314
    %v316 = vmul.f32 %v315, 1.442695
    %v317 = vpow.pop %v316
    %318 = vadd.xlane.f32.xlu0 %v317
    %v319 = vpop.xlane.xlu0 %318
    %v320 = vlog2.pop %v319
    %v321 = vmul.f32 %v320, 0.6931472
    %v322 = vsub.f32 %v315, %v321
    %323 = vst [vmem:[%s6] sm:$0xff] %v322
  $region33: #{gin_forward.7} parent=0 // pred_fallthru
    _
  // Predicated region
  $region34: #{gin_forward.7} parent=0 // pred_check
    _
  $region35: #{gin_forward.7} parent=0 // pred_check_branch
    %325 = sbr.rel (0) target = $region37
  $region36: #{gin_forward.7} parent=0 // pred_region
    _
  $region37: #{gin_forward.7} parent=0 // pred_fallthru
    _
  // Predicated region
  $region38: #{gin_forward.7} parent=0 // pred_check
    _
  $region39: #{gin_forward.7} parent=0 // pred_check_branch
    %327 = sbr.rel (0) target = $region41
  $region40: #{gin_forward.7} parent=0 // pred_region
    _
  $region41: #{gin_forward.7} parent=0 // pred_fallthru
    _

// kernel: gin_forward.4
$region0: #{gin_forward.4}
  #allocation0 [shape = 'u32[]', space=smem, size = 0x4, offset = 0x4, fixed_abs, tag = 'smem constant byte address 0x4 - core index']
  #allocation1 [shape = 'u32[144,128]{1,0:T(1,128)}', space=vmem, size = 0x12000, scoped, tag = 'internal scratch']
  #allocation2 [shape = 'f32[128,128]{1,0:T(8,128)}', space=vmem, size = 0x10000, scoped, tag = 'scratch operand']
  #allocation3 [shape = 'f32[1,1]{1,0:T(1,128)S(6)}', space=smem, size = 0x200, scoped, tag = 'scoped memory for gin_forward.4']
  %s0 = inlined_call_operand.<no memory space> [shape: f32[1,1], index: 0, kind: input, shape index: {}]
  %s1 = inlined_call_operand.vmem [shape: bf16[128,128], index: 1, kind: input, shape index: {}]
  %s2 = inlined_call_operand.vmem [shape: bf16[128,128], index: 2, kind: input, shape index: {}]
  %s3 = inlined_call_operand.vmem [shape: bf16[128,128], index: 3, kind: input, shape index: {}]
  %s4 = inlined_call_operand.vmem [shape: f32[128,128], index: 4, kind: input, shape index: {}]
  %s5 = inlined_call_operand.vmem [shape: f32[1,128], index: 5, kind: input, shape index: {}]
  %s6 = inlined_call_operand.vmem [shape: f32[128,128], index: 6, kind: input, shape index: {}]
  %s7 = inlined_call_operand.vmem [shape: f32[1,128], index: 7, kind: input, shape index: {}]
  %s8 = inlined_call_operand.vmem [shape: f32[1,128], index: 8, kind: input, shape index: {}]
  %s9 = inlined_call_operand.vmem [shape: f32[1,128], index: 9, kind: input, shape index: {}]
  %s10 = inlined_call_operand.vmem [shape: f32[128,128], index: 10, kind: output, shape index: {}]
  %s11 = sld [smem:[#allocation0]]
  $region58: #{gin_forward.4} parent=0
    _
  %s13 = ssub.s32 1, %s11
  %s14 = scalar_select 0, %s13, %s11
  %15 = sst [smem:[#allocation3]] %s0
  // Predicated region
  $region2: #{gin_forward.4} parent=0 // pred_check
    _
  $region3: #{gin_forward.4} parent=0 // pred_check_branch
    %17 = sbr.rel (0) target = $region5
  $region4: #{gin_forward.4} parent=0 // pred_region
    _
  $region5: #{gin_forward.4} parent=0 // pred_fallthru
    _
  // Predicated region
  $region6: #{gin_forward.4} parent=0 // pred_check
    _
  $region7: #{gin_forward.4} parent=0 // pred_check_branch
    %19 = sbr.rel (0) target = $region9
  $region8: #{gin_forward.4} parent=0 // pred_region
    _
  $region9: #{gin_forward.4} parent=0 // pred_fallthru
    _
  // Predicated region
  $region10: #{gin_forward.4} parent=0 // pred_check
    _
  $region11: #{gin_forward.4} parent=0 // pred_check_branch
    %21 = sbr.rel (0) target = $region13
  $region12: #{gin_forward.4} parent=0 // pred_region
    _
  $region13: #{gin_forward.4} parent=0 // pred_fallthru
    _
  // Predicated region
  $region14: #{gin_forward.4} parent=0 // pred_check
    _
  $region15: #{gin_forward.4} parent=0 // pred_check_branch
    %23 = sbr.rel (0) target = $region17
  $region16: #{gin_forward.4} parent=0 // pred_region
    _
  $region17: #{gin_forward.4} parent=0 // pred_fallthru
    _
  // Predicated region
  $region18: #{gin_forward.4} parent=0 // pred_check
    _
  $region19: #{gin_forward.4} parent=0 // pred_check_branch
    %25 = sbr.rel (0) target = $region21
  $region20: #{gin_forward.4} parent=0 // pred_region
    _
  $region21: #{gin_forward.4} parent=0 // pred_fallthru
    _
  // Predicated region
  $region22: #{gin_forward.4} parent=0 // pred_check
    _
  $region23: #{gin_forward.4} parent=0 // pred_check_branch
    %27 = sbr.rel (0) target = $region25
  $region24: #{gin_forward.4} parent=0 // pred_region
    _
  $region25: #{gin_forward.4} parent=0 // pred_fallthru
    _
  // Predicated region
  $region26: #{gin_forward.4} parent=0 // pred_check
    _
  $region27: #{gin_forward.4} parent=0 // pred_check_branch
    %29 = sbr.rel (0) target = $region29
  $region28: #{gin_forward.4} parent=0 // pred_region
    _
  $region29: #{gin_forward.4} parent=0 // pred_fallthru
    _
  // Predicated region
  $region30: #{gin_forward.4} parent=0 // pred_check
    _
  $region31: #{gin_forward.4} parent=0 // pred_check_branch
    %31 = sbr.rel (0) target = $region33
  $region32: #{gin_forward.4} parent=0 // pred_region
    _
  $region33: #{gin_forward.4} parent=0 // pred_fallthru
    _
  // Predicated region
  $region34: #{gin_forward.4} parent=0 // pred_check
    _
  $region35: #{gin_forward.4} parent=0 // pred_check_branch
    %33 = sbr.rel (0) target = $region37
  $region36: #{gin_forward.4} parent=0 // pred_region
    _
  $region37: #{gin_forward.4} parent=0 // pred_fallthru
    _
  // Predicated region
  $region38: #{gin_forward.4} parent=0 // pred_check
    _
  $region39: #{gin_forward.4} parent=0 // pred_check_branch
    %35 = sbr.rel (0) target = $region41
  $region40: #{gin_forward.4} parent=0 // pred_region
    _
  $region41: #{gin_forward.4} parent=0 // pred_fallthru
    _
  %p37 = scmp.eq.s32.totalorder 0, 0
  // Predicated region
  $region42: #{gin_forward.4} parent=0 // pred_check
    %p38 = pneg %p37
  $region43: #{gin_forward.4} parent=0 // pred_check_branch
    %40 = sbr.rel (%p38) target = $region45
  $region44: #{gin_forward.4} parent=0 // pred_region
    %s41 = smul.u32 0, 128
    %s42 = sshra.s32 %s41, 3
    %s43 = sand.u32 %s41, 7
    %s44 = smul.addr %s42, 4
    %s45 = scalar_lea.vmem %s2, %s44
    %v46 = vld [vmem:[%s45] sm:$0xf]
    %v47 = vld [vmem:[%s45 + $0x4] sm:$0xf]
    %v48 = vld [vmem:[%s45 + $0x8] sm:$0xf]
    %v49 = vld [vmem:[%s45 + $0xc] sm:$0xf]
    %v50 = vld [vmem:[%s45 + $0x10] sm:$0xf]
    %v51 = vld [vmem:[%s45 + $0x14] sm:$0xf]
    %v52 = vld [vmem:[%s45 + $0x18] sm:$0xf]
    %v53 = vld [vmem:[%s45 + $0x1c] sm:$0xf]
    %v54 = vld [vmem:[%s45 + $0x20] sm:$0xf]
    %v55 = vld [vmem:[%s45 + $0x24] sm:$0xf]
    %v56 = vld [vmem:[%s45 + $0x28] sm:$0xf]
    %v57 = vld [vmem:[%s45 + $0x2c] sm:$0xf]
    %v58 = vld [vmem:[%s45 + $0x30] sm:$0xf]
    %v59 = vld [vmem:[%s45 + $0x34] sm:$0xf]
    %v60 = vld [vmem:[%s45 + $0x38] sm:$0xf]
    %v61 = vld [vmem:[%s45 + $0x3c] sm:$0xf]
    %v62 = vunpack.c.l.bf16 %v46
    %v63 = vunpack.c.l.bf16 %v47
    %v64 = vunpack.c.l.bf16 %v48
    %v65 = vunpack.c.l.bf16 %v49
    %v66 = vunpack.c.l.bf16 %v50
    %v67 = vunpack.c.l.bf16 %v51
    %v68 = vunpack.c.l.bf16 %v52
    %v69 = vunpack.c.l.bf16 %v53
    %v70 = vunpack.c.l.bf16 %v54
    %v71 = vunpack.c.l.bf16 %v55
    %v72 = vunpack.c.l.bf16 %v56
    %v73 = vunpack.c.l.bf16 %v57
    %v74 = vunpack.c.l.bf16 %v58
    %v75 = vunpack.c.l.bf16 %v59
    %v76 = vunpack.c.l.bf16 %v60
    %v77 = vunpack.c.l.bf16 %v61
    %s78 = smul.addr %s42, 4
    %s79 = scalar_lea.vmem %s3, %s78
    %v80 = vld [vmem:[%s79] sm:$0xf]
    %v81 = vld [vmem:[%s79 + $0x4] sm:$0xf]
    %v82 = vld [vmem:[%s79 + $0x8] sm:$0xf]
    %v83 = vld [vmem:[%s79 + $0xc] sm:$0xf]
    %v84 = vld [vmem:[%s79 + $0x10] sm:$0xf]
    %v85 = vld [vmem:[%s79 + $0x14] sm:$0xf]
    %v86 = vld [vmem:[%s79 + $0x18] sm:$0xf]
    %v87 = vld [vmem:[%s79 + $0x1c] sm:$0xf]
    %v88 = vld [vmem:[%s79 + $0x20] sm:$0xf]
    %v89 = vld [vmem:[%s79 + $0x24] sm:$0xf]
    %v90 = vld [vmem:[%s79 + $0x28] sm:$0xf]
    %v91 = vld [vmem:[%s79 + $0x2c] sm:$0xf]
    %v92 = vld [vmem:[%s79 + $0x30] sm:$0xf]
    %v93 = vld [vmem:[%s79 + $0x34] sm:$0xf]
    %v94 = vld [vmem:[%s79 + $0x38] sm:$0xf]
    %v95 = vld [vmem:[%s79 + $0x3c] sm:$0xf]
    %v96 = vunpack.c.l.bf16 %v80
    %v97 = vunpack.c.l.bf16 %v81
    %v98 = vunpack.c.l.bf16 %v82
    %v99 = vunpack.c.l.bf16 %v83
    %v100 = vunpack.c.l.bf16 %v84
    %v101 = vunpack.c.l.bf16 %v85
    %v102 = vunpack.c.l.bf16 %v86
    %v103 = vunpack.c.l.bf16 %v87
    %v104 = vunpack.c.l.bf16 %v88
    %v105 = vunpack.c.l.bf16 %v89
    %v106 = vunpack.c.l.bf16 %v90
    %v107 = vunpack.c.l.bf16 %v91
    %v108 = vunpack.c.l.bf16 %v92
    %v109 = vunpack.c.l.bf16 %v93
    %v110 = vunpack.c.l.bf16 %v94
    %v111 = vunpack.c.l.bf16 %v95
    %v112 = vadd.f32 %v62, %v96
    %v113 = vadd.f32 %v63, %v97
    %v114 = vadd.f32 %v64, %v98
    %v115 = vadd.f32 %v65, %v99
    %v116 = vadd.f32 %v66, %v100
    %v117 = vadd.f32 %v67, %v101
    %v118 = vadd.f32 %v68, %v102
    %v119 = vadd.f32 %v69, %v103
    %v120 = vadd.f32 %v70, %v104
    %v121 = vadd.f32 %v71, %v105
    %v122 = vadd.f32 %v72, %v106
    %v123 = vadd.f32 %v73, %v107
    %v124 = vadd.f32 %v74, %v108
    %v125 = vadd.f32 %v75, %v109
    %v126 = vadd.f32 %v76, %v110
    %v127 = vadd.f32 %v77, %v111
    %s128 = sld [smem:[#allocation3]]
    %s129 = sadd.f32 %s128, 1.0
    %v130 = vstv %s129
    %v131 = vmul.f32 %v130, %v112
    %v132 = vmul.f32 %v130, %v113
    %v133 = vmul.f32 %v130, %v114
    %v134 = vmul.f32 %v130, %v115
    %v135 = vmul.f32 %v130, %v116
    %v136 = vmul.f32 %v130, %v117
    %v137 = vmul.f32 %v130, %v118
    %v138 = vmul.f32 %v130, %v119
    %v139 = vmul.f32 %v130, %v120
    %v140 = vmul.f32 %v130, %v121
    %v141 = vmul.f32 %v130, %v122
    %v142 = vmul.f32 %v130, %v123
    %v143 = vmul.f32 %v130, %v124
    %v144 = vmul.f32 %v130, %v125
    %v145 = vmul.f32 %v130, %v126
    %v146 = vmul.f32 %v130, %v127
    %147 = vst [vmem:[#allocation2] sm:$0xff] %v131
    %148 = vst [vmem:[#allocation2 + $0x8] sm:$0xff] %v132
    %149 = vst [vmem:[#allocation2 + $0x10] sm:$0xff] %v133
    %150 = vst [vmem:[#allocation2 + $0x18] sm:$0xff] %v134
    %151 = vst [vmem:[#allocation2 + $0x20] sm:$0xff] %v135
    %152 = vst [vmem:[#allocation2 + $0x28] sm:$0xff] %v136
    %153 = vst [vmem:[#allocation2 + $0x30] sm:$0xff] %v137
    %154 = vst [vmem:[#allocation2 + $0x38] sm:$0xff] %v138
    %155 = vst [vmem:[#allocation2 + $0x40] sm:$0xff] %v139
    %156 = vst [vmem:[#allocation2 + $0x48] sm:$0xff] %v140
    %157 = vst [vmem:[#allocation2 + $0x50] sm:$0xff] %v141
    %158 = vst [vmem:[#allocation2 + $0x58] sm:$0xff] %v142
    %159 = vst [vmem:[#allocation2 + $0x60] sm:$0xff] %v143
    %160 = vst [vmem:[#allocation2 + $0x68] sm:$0xff] %v144
    %161 = vst [vmem:[#allocation2 + $0x70] sm:$0xff] %v145
    %162 = vst [vmem:[#allocation2 + $0x78] sm:$0xff] %v146
  $region45: #{gin_forward.4} parent=0 // pred_fallthru
    _
  %s163 = smul.u32 0, 128
  %v164 = vld [vmem:[%s1] sm:$0xf]
  %v165 = vld [vmem:[%s1 + $0x4] sm:$0xf]
  %v166 = vld [vmem:[%s1 + $0x8] sm:$0xf]
  %v167 = vld [vmem:[%s1 + $0xc] sm:$0xf]
  %v168 = vld [vmem:[%s1 + $0x10] sm:$0xf]
  %v169 = vld [vmem:[%s1 + $0x14] sm:$0xf]
  %v170 = vld [vmem:[%s1 + $0x18] sm:$0xf]
  %v171 = vld [vmem:[%s1 + $0x1c] sm:$0xf]
  %v172 = vld [vmem:[%s1 + $0x20] sm:$0xf]
  %v173 = vld [vmem:[%s1 + $0x24] sm:$0xf]
  %v174 = vld [vmem:[%s1 + $0x28] sm:$0xf]
  %v175 = vld [vmem:[%s1 + $0x2c] sm:$0xf]
  %v176 = vld [vmem:[%s1 + $0x30] sm:$0xf]
  %v177 = vld [vmem:[%s1 + $0x34] sm:$0xf]
  %v178 = vld [vmem:[%s1 + $0x38] sm:$0xf]
  %v179 = vld [vmem:[%s1 + $0x3c] sm:$0xf]
  %v180 = vld [vmem:[#allocation2] sm:$0xff]
  %v181 = vld [vmem:[#allocation2 + $0x8] sm:$0xff]
  %v182 = vld [vmem:[#allocation2 + $0x10] sm:$0xff]
  %v183 = vld [vmem:[#allocation2 + $0x18] sm:$0xff]
  %v184 = vld [vmem:[#allocation2 + $0x20] sm:$0xff]
  %v185 = vld [vmem:[#allocation2 + $0x28] sm:$0xff]
  %v186 = vld [vmem:[#allocation2 + $0x30] sm:$0xff]
  %v187 = vld [vmem:[#allocation2 + $0x38] sm:$0xff]
  %v188 = vld [vmem:[#allocation2 + $0x40] sm:$0xff]
  %v189 = vld [vmem:[#allocation2 + $0x48] sm:$0xff]
  %v190 = vld [vmem:[#allocation2 + $0x50] sm:$0xff]
  %v191 = vld [vmem:[#allocation2 + $0x58] sm:$0xff]
  %v192 = vld [vmem:[#allocation2 + $0x60] sm:$0xff]
  %v193 = vld [vmem:[#allocation2 + $0x68] sm:$0xff]
  %v194 = vld [vmem:[#allocation2 + $0x70] sm:$0xff]
  %v195 = vld [vmem:[#allocation2 + $0x78] sm:$0xff]
  %s196 = sshra.s32 %s163, 3
  %s197 = sand.u32 %s163, 7
  %s198 = smul.addr %s196, 4
  %s199 = scalar_lea.vmem %s2, %s198
  %v200 = vld [vmem:[%s199] sm:$0xf]
  %v201 = vld [vmem:[%s199 + $0x4] sm:$0xf]
  %v202 = vld [vmem:[%s199 + $0x8] sm:$0xf]
  %v203 = vld [vmem:[%s199 + $0xc] sm:$0xf]
  %v204 = vld [vmem:[%s199 + $0x10] sm:$0xf]
  %v205 = vld [vmem:[%s199 + $0x14] sm:$0xf]
  %v206 = vld [vmem:[%s199 + $0x18] sm:$0xf]
  %v207 = vld [vmem:[%s199 + $0x1c] sm:$0xf]
  %v208 = vld [vmem:[%s199 + $0x20] sm:$0xf]
  %v209 = vld [vmem:[%s199 + $0x24] sm:$0xf]
  %v210 = vld [vmem:[%s199 + $0x28] sm:$0xf]
  %v211 = vld [vmem:[%s199 + $0x2c] sm:$0xf]
  %v212 = vld [vmem:[%s199 + $0x30] sm:$0xf]
  %v213 = vld [vmem:[%s199 + $0x34] sm:$0xf]
  %v214 = vld [vmem:[%s199 + $0x38] sm:$0xf]
  %v215 = vld [vmem:[%s199 + $0x3c] sm:$0xf]
  %v232 = vunpack.c.l.b16 %v164
  %v233 = vunpack.c.l.b16 %v165
  %v234 = vunpack.c.l.b16 %v166
  %v235 = vunpack.c.l.b16 %v167
  %v236 = vunpack.c.l.b16 %v168
  %v237 = vunpack.c.l.b16 %v169
  %v238 = vunpack.c.l.b16 %v170
  %v239 = vunpack.c.l.b16 %v171
  %v240 = vunpack.c.l.b16 %v172
  %v241 = vunpack.c.l.b16 %v173
  %v242 = vunpack.c.l.b16 %v174
  %v243 = vunpack.c.l.b16 %v175
  %v244 = vunpack.c.l.b16 %v176
  %v245 = vunpack.c.l.b16 %v177
  %v246 = vunpack.c.l.b16 %v178
  %v247 = vunpack.c.l.b16 %v179
  %v248 = vpack.c.b16 %v233, %v232
  %v249 = vpack.c.b16 %v235, %v234
  %v250 = vpack.c.b16 %v237, %v236
  %v251 = vpack.c.b16 %v239, %v238
  %v252 = vpack.c.b16 %v241, %v240
  %v253 = vpack.c.b16 %v243, %v242
  %v254 = vpack.c.b16 %v245, %v244
  %v255 = vpack.c.b16 %v247, %v246
  %v280 = vunpack.c.l.b16 %v200
  %v281 = vunpack.c.l.b16 %v201
  %v282 = vunpack.c.l.b16 %v202
  %v283 = vunpack.c.l.b16 %v203
  %v284 = vunpack.c.l.b16 %v204
  %v285 = vunpack.c.l.b16 %v205
  %v286 = vunpack.c.l.b16 %v206
  %v287 = vunpack.c.l.b16 %v207
  %v288 = vunpack.c.l.b16 %v208
  %v289 = vunpack.c.l.b16 %v209
  %v290 = vunpack.c.l.b16 %v210
  %v291 = vunpack.c.l.b16 %v211
  %v292 = vunpack.c.l.b16 %v212
  %v293 = vunpack.c.l.b16 %v213
  %v294 = vunpack.c.l.b16 %v214
  %v295 = vunpack.c.l.b16 %v215
  %v296 = vpack.c.b16 %v281, %v280
  %v297 = vpack.c.b16 %v283, %v282
  %v298 = vpack.c.b16 %v285, %v284
  %v299 = vpack.c.b16 %v287, %v286
  %v300 = vpack.c.b16 %v289, %v288
  %v301 = vpack.c.b16 %v291, %v290
  %v302 = vpack.c.b16 %v293, %v292
  %v303 = vpack.c.b16 %v295, %v294
  %312 = vmatprep.subr.bf16.mxu0 0
  %313 = vmatpush1.bf16.msra.mxu0 %v296
  %314 = vmatprep.subr.bf16.mxu0 0
  %315 = vmatpush1.bf16.msra.mxu0 %v297
  %316 = vmatprep.subr.bf16.mxu0 0
  %317 = vmatpush1.bf16.msra.mxu0 %v298
  %318 = vmatprep.subr.bf16.mxu0 0
  %319 = vmatpush1.bf16.msra.mxu0 %v299
  %320 = vmatprep.subr.bf16.mxu0 0
  %321 = vmatpush1.bf16.msra.mxu0 %v300
  %322 = vmatprep.subr.bf16.mxu0 0
  %323 = vmatpush1.bf16.msra.mxu0 %v301
  %324 = vmatprep.subr.bf16.mxu0 0
  %325 = vmatpush1.bf16.msra.mxu0 %v302
  %326 = vmatprep.subr.bf16.mxu0 0
  %327 = vmatpush1.bf16.msra.mxu0 %v303
  %328 = vmatprep.subr.bf16.mxu0 0
  %329 = vmatpush1.bf16.msra.mxu0 0
  %330 = vmatprep.subr.bf16.mxu0 0
  %331 = vmatpush1.bf16.msra.mxu0 0
  %332 = vmatprep.subr.bf16.mxu0 0
  %333 = vmatpush1.bf16.msra.mxu0 0
  %334 = vmatprep.subr.bf16.mxu0 0
  %335 = vmatpush1.bf16.msra.mxu0 0
  %336 = vmatprep.subr.bf16.mxu0 0
  %337 = vmatpush1.bf16.msra.mxu0 0
  %338 = vmatprep.subr.bf16.mxu0 0
  %339 = vmatpush1.bf16.msra.mxu0 0
  %340 = vmatprep.subr.bf16.mxu0 0
  %341 = vmatpush1.bf16.msra.mxu0 0
  %342 = vmatprep.subr.bf16.mxu0 0
  %343 = vmatpush1.bf16.msra.mxu0 0
  %344 = vmatprep.mubr.bf16.mxu0 0
  %345 = vmatmul.mubr.bf16.gmra.mrb[0].mxu0 %v248
  %v346 = vpop.f32.mrb[0].mxu0
  %v347 = vadd.f32 0.0, %v346
  %v348 = vpop.f32.mrb[0].mxu0
  %v349 = vpop.f32.mrb[0].mxu0
  %v350 = vadd.f32 0.0, %v349
  %v351 = vpop.f32.mrb[0].mxu0
  %352 = vmatprep.mubr.bf16.mxu0 0
  %353 = vmatmul.mubr.bf16.gmra.mrb[0].mxu0 %v249
  %v354 = vpop.f32.mrb[0].mxu0
  %v355 = vadd.f32 0.0, %v354
  %v356 = vpop.f32.mrb[0].mxu0
  %v357 = vpop.f32.mrb[0].mxu0
  %v358 = vadd.f32 0.0, %v357
  %v359 = vpop.f32.mrb[0].mxu0
  %360 = vmatprep.mubr.bf16.mxu0 0
  %361 = vmatmul.mubr.bf16.gmra.mrb[0].mxu0 %v250
  %v362 = vpop.f32.mrb[0].mxu0
  %v363 = vadd.f32 0.0, %v362
  %v364 = vpop.f32.mrb[0].mxu0
  %v365 = vpop.f32.mrb[0].mxu0
  %v366 = vadd.f32 0.0, %v365
  %v367 = vpop.f32.mrb[0].mxu0
  %368 = vmatprep.mubr.bf16.mxu0 0
  %369 = vmatmul.mubr.bf16.gmra.mrb[0].mxu0 %v251
  %v370 = vpop.f32.mrb[0].mxu0
  %v371 = vadd.f32 0.0, %v370
  %v372 = vpop.f32.mrb[0].mxu0
  %v373 = vpop.f32.mrb[0].mxu0
  %v374 = vadd.f32 0.0, %v373
  %v375 = vpop.f32.mrb[0].mxu0
  %376 = vmatprep.mubr.bf16.mxu0 0
  %377 = vmatmul.mubr.bf16.gmra.mrb[0].mxu0 %v252
  %v378 = vpop.f32.mrb[0].mxu0
  %v379 = vadd.f32 0.0, %v378
  %v380 = vpop.f32.mrb[0].mxu0
  %v381 = vpop.f32.mrb[0].mxu0
  %v382 = vadd.f32 0.0, %v381
  %v383 = vpop.f32.mrb[0].mxu0
  %384 = vmatprep.mubr.bf16.mxu0 0
  %385 = vmatmul.mubr.bf16.gmra.mrb[0].mxu0 %v253
  %v386 = vpop.f32.mrb[0].mxu0
  %v387 = vadd.f32 0.0, %v386
  %v388 = vpop.f32.mrb[0].mxu0
  %v389 = vpop.f32.mrb[0].mxu0
  %v390 = vadd.f32 0.0, %v389
  %v391 = vpop.f32.mrb[0].mxu0
  %392 = vmatprep.mubr.bf16.mxu0 0
  %393 = vmatmul.mubr.bf16.gmra.mrb[0].mxu0 %v254
  %v394 = vpop.f32.mrb[0].mxu0
  %v395 = vadd.f32 0.0, %v394
  %v396 = vpop.f32.mrb[0].mxu0
  %v397 = vpop.f32.mrb[0].mxu0
  %v398 = vadd.f32 0.0, %v397
  %v399 = vpop.f32.mrb[0].mxu0
  %400 = vmatprep.mubr.bf16.mxu0 0
  %401 = vmatmul.mubr.bf16.gmra.mrb[0].mxu0 %v255
  %v402 = vpop.f32.mrb[0].mxu0
  %v403 = vadd.f32 0.0, %v402
  %v404 = vpop.f32.mrb[0].mxu0
  %v405 = vpop.f32.mrb[0].mxu0
  %v406 = vadd.f32 0.0, %v405
  %v407 = vpop.f32.mrb[0].mxu0
  %408 = vdwg.mxu0
  %v409 = vadd.f32 %v180, %v347
  %v410 = vadd.f32 %v181, %v350
  %v411 = vadd.f32 %v182, %v355
  %v412 = vadd.f32 %v183, %v358
  %v413 = vadd.f32 %v184, %v363
  %v414 = vadd.f32 %v185, %v366
  %v415 = vadd.f32 %v186, %v371
  %v416 = vadd.f32 %v187, %v374
  %v417 = vadd.f32 %v188, %v379
  %v418 = vadd.f32 %v189, %v382
  %v419 = vadd.f32 %v190, %v387
  %v420 = vadd.f32 %v191, %v390
  %v421 = vadd.f32 %v192, %v395
  %v422 = vadd.f32 %v193, %v398
  %v423 = vadd.f32 %v194, %v403
  %v424 = vadd.f32 %v195, %v406
  %425 = vst [vmem:[#allocation2] sm:$0xff] %v409
  %426 = vst [vmem:[#allocation2 + $0x8] sm:$0xff] %v410
  %427 = vst [vmem:[#allocation2 + $0x10] sm:$0xff] %v411
  %428 = vst [vmem:[#allocation2 + $0x18] sm:$0xff] %v412
  %429 = vst [vmem:[#allocation2 + $0x20] sm:$0xff] %v413
  %430 = vst [vmem:[#allocation2 + $0x28] sm:$0xff] %v414
  %431 = vst [vmem:[#allocation2 + $0x30] sm:$0xff] %v415
  %432 = vst [vmem:[#allocation2 + $0x38] sm:$0xff] %v416
  %433 = vst [vmem:[#allocation2 + $0x40] sm:$0xff] %v417
  %434 = vst [vmem:[#allocation2 + $0x48] sm:$0xff] %v418
  %435 = vst [vmem:[#allocation2 + $0x50] sm:$0xff] %v419
  %436 = vst [vmem:[#allocation2 + $0x58] sm:$0xff] %v420
  %437 = vst [vmem:[#allocation2 + $0x60] sm:$0xff] %v421
  %438 = vst [vmem:[#allocation2 + $0x68] sm:$0xff] %v422
  %439 = vst [vmem:[#allocation2 + $0x70] sm:$0xff] %v423
  %440 = vst [vmem:[#allocation2 + $0x78] sm:$0xff] %v424
  %v441 = vld [vmem:[#allocation2] sm:$0xff]
  %v442 = vld [vmem:[#allocation2 + $0x8] sm:$0xff]
  %v443 = vld [vmem:[#allocation2 + $0x10] sm:$0xff]
  %v444 = vld [vmem:[#allocation2 + $0x18] sm:$0xff]
  %v445 = vld [vmem:[#allocation2 + $0x20] sm:$0xff]
  %v446 = vld [vmem:[#allocation2 + $0x28] sm:$0xff]
  %v447 = vld [vmem:[#allocation2 + $0x30] sm:$0xff]
  %v448 = vld [vmem:[#allocation2 + $0x38] sm:$0xff]
  %v449 = vld [vmem:[#allocation2 + $0x40] sm:$0xff]
  %v450 = vld [vmem:[#allocation2 + $0x48] sm:$0xff]
  %v451 = vld [vmem:[#allocation2 + $0x50] sm:$0xff]
  %v452 = vld [vmem:[#allocation2 + $0x58] sm:$0xff]
  %v453 = vld [vmem:[#allocation2 + $0x60] sm:$0xff]
  %v454 = vld [vmem:[#allocation2 + $0x68] sm:$0xff]
  %v455 = vld [vmem:[#allocation2 + $0x70] sm:$0xff]
  %v456 = vld [vmem:[#allocation2 + $0x78] sm:$0xff]
  %s457 = smul.addr %s196, 4
  %s458 = scalar_lea.vmem %s3, %s457
  %v459 = vld [vmem:[%s458] sm:$0xf]
  %v460 = vld [vmem:[%s458 + $0x4] sm:$0xf]
  %v461 = vld [vmem:[%s458 + $0x8] sm:$0xf]
  %v462 = vld [vmem:[%s458 + $0xc] sm:$0xf]
  %v463 = vld [vmem:[%s458 + $0x10] sm:$0xf]
  %v464 = vld [vmem:[%s458 + $0x14] sm:$0xf]
  %v465 = vld [vmem:[%s458 + $0x18] sm:$0xf]
  %v466 = vld [vmem:[%s458 + $0x1c] sm:$0xf]
  %v467 = vld [vmem:[%s458 + $0x20] sm:$0xf]
  %v468 = vld [vmem:[%s458 + $0x24] sm:$0xf]
  %v469 = vld [vmem:[%s458 + $0x28] sm:$0xf]
  %v470 = vld [vmem:[%s458 + $0x2c] sm:$0xf]
  %v471 = vld [vmem:[%s458 + $0x30] sm:$0xf]
  %v472 = vld [vmem:[%s458 + $0x34] sm:$0xf]
  %v473 = vld [vmem:[%s458 + $0x38] sm:$0xf]
  %v474 = vld [vmem:[%s458 + $0x3c] sm:$0xf]
  %v491 = vunpack.c.l.b16 %v459
  %v492 = vunpack.c.l.b16 %v460
  %v493 = vunpack.c.l.b16 %v461
  %v494 = vunpack.c.l.b16 %v462
  %v495 = vunpack.c.l.b16 %v463
  %v496 = vunpack.c.l.b16 %v464
  %v497 = vunpack.c.l.b16 %v465
  %v498 = vunpack.c.l.b16 %v466
  %v499 = vunpack.c.l.b16 %v467
  %v500 = vunpack.c.l.b16 %v468
  %v501 = vunpack.c.l.b16 %v469
  %v502 = vunpack.c.l.b16 %v470
  %v503 = vunpack.c.l.b16 %v471
  %v504 = vunpack.c.l.b16 %v472
  %v505 = vunpack.c.l.b16 %v473
  %v506 = vunpack.c.l.b16 %v474
  %v507 = vpack.c.b16 %v492, %v491
  %v508 = vpack.c.b16 %v494, %v493
  %v509 = vpack.c.b16 %v496, %v495
  %v510 = vpack.c.b16 %v498, %v497
  %v511 = vpack.c.b16 %v500, %v499
  %v512 = vpack.c.b16 %v502, %v501
  %v513 = vpack.c.b16 %v504, %v503
  %v514 = vpack.c.b16 %v506, %v505
  %523 = vmatprep.subr.bf16.mxu0 0
  %524 = vmatpush1.bf16.msra.mxu0 %v507
  %525 = vmatprep.subr.bf16.mxu0 0
  %526 = vmatpush1.bf16.msra.mxu0 %v508
  %527 = vmatprep.subr.bf16.mxu0 0
  %528 = vmatpush1.bf16.msra.mxu0 %v509
  %529 = vmatprep.subr.bf16.mxu0 0
  %530 = vmatpush1.bf16.msra.mxu0 %v510
  %531 = vmatprep.subr.bf16.mxu0 0
  %532 = vmatpush1.bf16.msra.mxu0 %v511
  %533 = vmatprep.subr.bf16.mxu0 0
  %534 = vmatpush1.bf16.msra.mxu0 %v512
  %535 = vmatprep.subr.bf16.mxu0 0
  %536 = vmatpush1.bf16.msra.mxu0 %v513
  %537 = vmatprep.subr.bf16.mxu0 0
  %538 = vmatpush1.bf16.msra.mxu0 %v514
  %539 = vmatprep.subr.bf16.mxu0 0
  %540 = vmatpush1.bf16.msra.mxu0 0
  %541 = vmatprep.subr.bf16.mxu0 0
  %542 = vmatpush1.bf16.msra.mxu0 0
  %543 = vmatprep.subr.bf16.mxu0 0
  %544 = vmatpush1.bf16.msra.mxu0 0
  %545 = vmatprep.subr.bf16.mxu0 0
  %546 = vmatpush1.bf16.msra.mxu0 0
  %547 = vmatprep.subr.bf16.mxu0 0
  %548 = vmatpush1.bf16.msra.mxu0 0
  %549 = vmatprep.subr.bf16.mxu0 0
  %550 = vmatpush1.bf16.msra.mxu0 0
  %551 = vmatprep.subr.bf16.mxu0 0
  %552 = vmatpush1.bf16.msra.mxu0 0
  %553 = vmatprep.subr.bf16.mxu0 0
  %554 = vmatpush1.bf16.msra.mxu0 0
  %555 = vmatprep.mubr.bf16.mxu0 0
  %556 = vmatmul.mubr.bf16.gmra.mrb[0].mxu0 %v248
  %v557 = vpop.f32.mrb[0].mxu0
  %v558 = vadd.f32 0.0, %v557
  %v559 = vpop.f32.mrb[0].mxu0
  %v560 = vpop.f32.mrb[0].mxu0
  %v561 = vadd.f32 0.0, %v560
  %v562 = vpop.f32.mrb[0].mxu0
  %563 = vmatprep.mubr.bf16.mxu0 0
  %564 = vmatmul.mubr.bf16.gmra.mrb[0].mxu0 %v249
  %v565 = vpop.f32.mrb[0].mxu0
  %v566 = vadd.f32 0.0, %v565
  %v567 = vpop.f32.mrb[0].mxu0
  %v568 = vpop.f32.mrb[0].mxu0
  %v569 = vadd.f32 0.0, %v568
  %v570 = vpop.f32.mrb[0].mxu0
  %571 = vmatprep.mubr.bf16.mxu0 0
  %572 = vmatmul.mubr.bf16.gmra.mrb[0].mxu0 %v250
  %v573 = vpop.f32.mrb[0].mxu0
  %v574 = vadd.f32 0.0, %v573
  %v575 = vpop.f32.mrb[0].mxu0
  %v576 = vpop.f32.mrb[0].mxu0
  %v577 = vadd.f32 0.0, %v576
  %v578 = vpop.f32.mrb[0].mxu0
  %579 = vmatprep.mubr.bf16.mxu0 0
  %580 = vmatmul.mubr.bf16.gmra.mrb[0].mxu0 %v251
  %v581 = vpop.f32.mrb[0].mxu0
  %v582 = vadd.f32 0.0, %v581
  %v583 = vpop.f32.mrb[0].mxu0
  %v584 = vpop.f32.mrb[0].mxu0
  %v585 = vadd.f32 0.0, %v584
  %v586 = vpop.f32.mrb[0].mxu0
  %587 = vmatprep.mubr.bf16.mxu0 0
  %588 = vmatmul.mubr.bf16.gmra.mrb[0].mxu0 %v252
  %v589 = vpop.f32.mrb[0].mxu0
  %v590 = vadd.f32 0.0, %v589
  %v591 = vpop.f32.mrb[0].mxu0
  %v592 = vpop.f32.mrb[0].mxu0
  %v593 = vadd.f32 0.0, %v592
  %v594 = vpop.f32.mrb[0].mxu0
  %595 = vmatprep.mubr.bf16.mxu0 0
  %596 = vmatmul.mubr.bf16.gmra.mrb[0].mxu0 %v253
  %v597 = vpop.f32.mrb[0].mxu0
  %v598 = vadd.f32 0.0, %v597
  %v599 = vpop.f32.mrb[0].mxu0
  %v600 = vpop.f32.mrb[0].mxu0
  %v601 = vadd.f32 0.0, %v600
  %v602 = vpop.f32.mrb[0].mxu0
  %603 = vmatprep.mubr.bf16.mxu0 0
  %604 = vmatmul.mubr.bf16.gmra.mrb[0].mxu0 %v254
  %v605 = vpop.f32.mrb[0].mxu0
  %v606 = vadd.f32 0.0, %v605
  %v607 = vpop.f32.mrb[0].mxu0
  %v608 = vpop.f32.mrb[0].mxu0
  %v609 = vadd.f32 0.0, %v608
  %v610 = vpop.f32.mrb[0].mxu0
  %611 = vmatprep.mubr.bf16.mxu0 0
  %612 = vmatmul.mubr.bf16.gmra.mrb[0].mxu0 %v255
  %v613 = vpop.f32.mrb[0].mxu0
  %v614 = vadd.f32 0.0, %v613
  %v615 = vpop.f32.mrb[0].mxu0
  %v616 = vpop.f32.mrb[0].mxu0
  %v617 = vadd.f32 0.0, %v616
  %v618 = vpop.f32.mrb[0].mxu0
  %619 = vdwg.mxu0
  %v620 = vadd.f32 %v441, %v558
  %v621 = vadd.f32 %v442, %v561
  %v622 = vadd.f32 %v443, %v566
  %v623 = vadd.f32 %v444, %v569
  %v624 = vadd.f32 %v445, %v574
  %v625 = vadd.f32 %v446, %v577
  %v626 = vadd.f32 %v447, %v582
  %v627 = vadd.f32 %v448, %v585
  %v628 = vadd.f32 %v449, %v590
  %v629 = vadd.f32 %v450, %v593
  %v630 = vadd.f32 %v451, %v598
  %v631 = vadd.f32 %v452, %v601
  %v632 = vadd.f32 %v453, %v606
  %v633 = vadd.f32 %v454, %v609
  %v634 = vadd.f32 %v455, %v614
  %v635 = vadd.f32 %v456, %v617
  %636 = vst [vmem:[#allocation2] sm:$0xff] %v620
  %637 = vst [vmem:[#allocation2 + $0x8] sm:$0xff] %v621
  %638 = vst [vmem:[#allocation2 + $0x10] sm:$0xff] %v622
  %639 = vst [vmem:[#allocation2 + $0x18] sm:$0xff] %v623
  %640 = vst [vmem:[#allocation2 + $0x20] sm:$0xff] %v624
  %641 = vst [vmem:[#allocation2 + $0x28] sm:$0xff] %v625
  %642 = vst [vmem:[#allocation2 + $0x30] sm:$0xff] %v626
  %643 = vst [vmem:[#allocation2 + $0x38] sm:$0xff] %v627
  %644 = vst [vmem:[#allocation2 + $0x40] sm:$0xff] %v628
  %645 = vst [vmem:[#allocation2 + $0x48] sm:$0xff] %v629
  %646 = vst [vmem:[#allocation2 + $0x50] sm:$0xff] %v630
  %647 = vst [vmem:[#allocation2 + $0x58] sm:$0xff] %v631
  %648 = vst [vmem:[#allocation2 + $0x60] sm:$0xff] %v632
  %649 = vst [vmem:[#allocation2 + $0x68] sm:$0xff] %v633
  %650 = vst [vmem:[#allocation2 + $0x70] sm:$0xff] %v634
  %651 = vst [vmem:[#allocation2 + $0x78] sm:$0xff] %v635
  // Predicated region
  $region46: #{gin_forward.4} parent=0 // pred_check
    %p652 = pneg %p37
  $region47: #{gin_forward.4} parent=0 // pred_check_branch
    %654 = sbr.rel (%p652) target = $region49
  $region48: #{gin_forward.4} parent=0 // pred_region
    %v655 = vld [vmem:[#allocation2] sm:$0xff]
    %v656 = vld [vmem:[#allocation2 + $0x8] sm:$0xff]
    %v657 = vld [vmem:[#allocation2 + $0x10] sm:$0xff]
    %v658 = vld [vmem:[#allocation2 + $0x18] sm:$0xff]
    %v659 = vld [vmem:[#allocation2 + $0x20] sm:$0xff]
    %v660 = vld [vmem:[#allocation2 + $0x28] sm:$0xff]
    %v661 = vld [vmem:[#allocation2 + $0x30] sm:$0xff]
    %v662 = vld [vmem:[#allocation2 + $0x38] sm:$0xff]
    %v663 = vld [vmem:[#allocation2 + $0x40] sm:$0xff]
    %v664 = vld [vmem:[#allocation2 + $0x48] sm:$0xff]
    %v665 = vld [vmem:[#allocation2 + $0x50] sm:$0xff]
    %v666 = vld [vmem:[#allocation2 + $0x58] sm:$0xff]
    %v667 = vld [vmem:[#allocation2 + $0x60] sm:$0xff]
    %v668 = vld [vmem:[#allocation2 + $0x68] sm:$0xff]
    %v669 = vld [vmem:[#allocation2 + $0x70] sm:$0xff]
    %v670 = vld [vmem:[#allocation2 + $0x78] sm:$0xff]
    %v671 = vld [vmem:[%s4] sm:$0xff]
    %v672 = vld [vmem:[%s4 + $0x8] sm:$0xff]
    %v673 = vld [vmem:[%s4 + $0x10] sm:$0xff]
    %v674 = vld [vmem:[%s4 + $0x18] sm:$0xff]
    %v675 = vld [vmem:[%s4 + $0x20] sm:$0xff]
    %v676 = vld [vmem:[%s4 + $0x28] sm:$0xff]
    %v677 = vld [vmem:[%s4 + $0x30] sm:$0xff]
    %v678 = vld [vmem:[%s4 + $0x38] sm:$0xff]
    %v679 = vld [vmem:[%s4 + $0x40] sm:$0xff]
    %v680 = vld [vmem:[%s4 + $0x48] sm:$0xff]
    %v681 = vld [vmem:[%s4 + $0x50] sm:$0xff]
    %v682 = vld [vmem:[%s4 + $0x58] sm:$0xff]
    %v683 = vld [vmem:[%s4 + $0x60] sm:$0xff]
    %v684 = vld [vmem:[%s4 + $0x68] sm:$0xff]
    %v685 = vld [vmem:[%s4 + $0x70] sm:$0xff]
    %v686 = vld [vmem:[%s4 + $0x78] sm:$0xff]
    %v687 = vld [vmem:[%s5] sm:$0x1]
    %v689 = vlaneseq
    %v690 = vshrl.u32 %v689, 7
    %v691 = vsub.s32 0, %v690
    %v692 = vrot.slane %v687, %v691
    %694 = vmatprep.subr.mxu0 0.0
    %695 = vmatpush1.msra.mxu0 %v671
    %696 = vmatprep.subr.mxu0 0.0
    %697 = vmatpush1.msra.mxu0 %v672
    %698 = vmatprep.subr.mxu0 0.0
    %699 = vmatpush1.msra.mxu0 %v673
    %700 = vmatprep.subr.mxu0 0.0
    %701 = vmatpush1.msra.mxu0 %v674
    %702 = vmatprep.subr.mxu0 0.0
    %703 = vmatpush1.msra.mxu0 %v675
    %704 = vmatprep.subr.mxu0 0.0
    %705 = vmatpush1.msra.mxu0 %v676
    %706 = vmatprep.subr.mxu0 0.0
    %707 = vmatpush1.msra.mxu0 %v677
    %708 = vmatprep.subr.mxu0 0.0
    %709 = vmatpush1.msra.mxu0 %v678
    %710 = vmatprep.subr.mxu0 0.0
    %711 = vmatpush1.msra.mxu0 %v679
    %712 = vmatprep.subr.mxu0 0.0
    %713 = vmatpush1.msra.mxu0 %v680
    %714 = vmatprep.subr.mxu0 0.0
    %715 = vmatpush1.msra.mxu0 %v681
    %716 = vmatprep.subr.mxu0 0.0
    %717 = vmatpush1.msra.mxu0 %v682
    %718 = vmatprep.subr.mxu0 0.0
    %719 = vmatpush1.msra.mxu0 %v683
    %720 = vmatprep.subr.mxu0 0.0
    %721 = vmatpush1.msra.mxu0 %v684
    %722 = vmatprep.subr.mxu0 0.0
    %723 = vmatpush1.msra.mxu0 %v685
    %724 = vmatprep.subr.mxu0 0.0
    %725 = vmatpush1.msra.mxu0 %v686
    %726 = vmatprep.subr.mxu0 0.0
    %727 = vmatpush1.msra.mxu0 0.0
    %728 = vmatprep.subr.mxu0 0.0
    %729 = vmatpush1.msra.mxu0 0.0
    %730 = vmatprep.subr.mxu0 0.0
    %731 = vmatpush1.msra.mxu0 0.0
    %732 = vmatprep.subr.mxu0 0.0
    %733 = vmatpush1.msra.mxu0 0.0
    %734 = vmatprep.subr.mxu0 0.0
    %735 = vmatpush1.msra.mxu0 0.0
    %736 = vmatprep.subr.mxu0 0.0
    %737 = vmatpush1.msra.mxu0 0.0
    %738 = vmatprep.subr.mxu0 0.0
    %739 = vmatpush1.msra.mxu0 0.0
    %740 = vmatprep.subr.mxu0 0.0
    %741 = vmatpush1.msra.mxu0 0.0
    %742 = vmatprep.subr.mxu0 0.0
    %743 = vmatpush1.msra.mxu0 0.0
    %744 = vmatprep.subr.mxu0 0.0
    %745 = vmatpush1.msra.mxu0 0.0
    %746 = vmatprep.subr.mxu0 0.0
    %747 = vmatpush1.msra.mxu0 0.0
    %748 = vmatprep.subr.mxu0 0.0
    %749 = vmatpush1.msra.mxu0 0.0
    %750 = vmatprep.subr.mxu0 0.0
    %751 = vmatpush1.msra.mxu0 0.0
    %752 = vmatprep.subr.mxu0 0.0
    %753 = vmatpush1.msra.mxu0 0.0
    %754 = vmatprep.subr.mxu0 0.0
    %755 = vmatpush1.msra.mxu0 0.0
    %756 = vmatprep.subr.mxu0 0.0
    %757 = vmatpush1.msra.mxu0 0.0
    %758 = vmatprep.mubr.f32.mxu0 0.0
    %759 = vmatmul.mubr.f32.gmra.mrb[0].mxu0 %v655
    %v760 = vpop.f32.mrb[0].mxu0
    %v761 = vadd.f32 %v692, %v760
    %v762 = vpop.f32.mrb[0].mxu0
    %763 = vmatprep.mubr.f32.mxu0 0.0
    %764 = vmatmul.mubr.f32.gmra.mrb[0].mxu0 %v656
    %v765 = vpop.f32.mrb[0].mxu0
    %v766 = vadd.f32 %v692, %v765
    %v767 = vpop.f32.mrb[0].mxu0
    %768 = vmatprep.mubr.f32.mxu0 0.0
    %769 = vmatmul.mubr.f32.gmra.mrb[0].mxu0 %v657
    %v770 = vpop.f32.mrb[0].mxu0
    %v771 = vadd.f32 %v692, %v770
    %v772 = vpop.f32.mrb[0].mxu0
    %773 = vmatprep.mubr.f32.mxu0 0.0
    %774 = vmatmul.mubr.f32.gmra.mrb[0].mxu0 %v658
    %v775 = vpop.f32.mrb[0].mxu0
    %v776 = vadd.f32 %v692, %v775
    %v777 = vpop.f32.mrb[0].mxu0
    %778 = vmatprep.mubr.f32.mxu0 0.0
    %779 = vmatmul.mubr.f32.gmra.mrb[0].mxu0 %v659
    %v780 = vpop.f32.mrb[0].mxu0
    %v781 = vadd.f32 %v692, %v780
    %v782 = vpop.f32.mrb[0].mxu0
    %783 = vmatprep.mubr.f32.mxu0 0.0
    %784 = vmatmul.mubr.f32.gmra.mrb[0].mxu0 %v660
    %v785 = vpop.f32.mrb[0].mxu0
    %v786 = vadd.f32 %v692, %v785
    %v787 = vpop.f32.mrb[0].mxu0
    %788 = vmatprep.mubr.f32.mxu0 0.0
    %789 = vmatmul.mubr.f32.gmra.mrb[0].mxu0 %v661
    %v790 = vpop.f32.mrb[0].mxu0
    %v791 = vadd.f32 %v692, %v790
    %v792 = vpop.f32.mrb[0].mxu0
    %793 = vmatprep.mubr.f32.mxu0 0.0
    %794 = vmatmul.mubr.f32.gmra.mrb[0].mxu0 %v662
    %v795 = vpop.f32.mrb[0].mxu0
    %v796 = vadd.f32 %v692, %v795
    %v797 = vpop.f32.mrb[0].mxu0
    %798 = vmatprep.mubr.f32.mxu0 0.0
    %799 = vmatmul.mubr.f32.gmra.mrb[0].mxu0 %v663
    %v800 = vpop.f32.mrb[0].mxu0
    %v801 = vadd.f32 %v692, %v800
    %v802 = vpop.f32.mrb[0].mxu0
    %803 = vmatprep.mubr.f32.mxu0 0.0
    %804 = vmatmul.mubr.f32.gmra.mrb[0].mxu0 %v664
    %v805 = vpop.f32.mrb[0].mxu0
    %v806 = vadd.f32 %v692, %v805
    %v807 = vpop.f32.mrb[0].mxu0
    %808 = vmatprep.mubr.f32.mxu0 0.0
    %809 = vmatmul.mubr.f32.gmra.mrb[0].mxu0 %v665
    %v810 = vpop.f32.mrb[0].mxu0
    %v811 = vadd.f32 %v692, %v810
    %v812 = vpop.f32.mrb[0].mxu0
    %813 = vmatprep.mubr.f32.mxu0 0.0
    %814 = vmatmul.mubr.f32.gmra.mrb[0].mxu0 %v666
    %v815 = vpop.f32.mrb[0].mxu0
    %v816 = vadd.f32 %v692, %v815
    %v817 = vpop.f32.mrb[0].mxu0
    %818 = vmatprep.mubr.f32.mxu0 0.0
    %819 = vmatmul.mubr.f32.gmra.mrb[0].mxu0 %v667
    %v820 = vpop.f32.mrb[0].mxu0
    %v821 = vadd.f32 %v692, %v820
    %v822 = vpop.f32.mrb[0].mxu0
    %823 = vmatprep.mubr.f32.mxu0 0.0
    %824 = vmatmul.mubr.f32.gmra.mrb[0].mxu0 %v668
    %v825 = vpop.f32.mrb[0].mxu0
    %v826 = vadd.f32 %v692, %v825
    %v827 = vpop.f32.mrb[0].mxu0
    %828 = vmatprep.mubr.f32.mxu0 0.0
    %829 = vmatmul.mubr.f32.gmra.mrb[0].mxu0 %v669
    %v830 = vpop.f32.mrb[0].mxu0
    %v831 = vadd.f32 %v692, %v830
    %v832 = vpop.f32.mrb[0].mxu0
    %833 = vmatprep.mubr.f32.mxu0 0.0
    %834 = vmatmul.mubr.f32.gmra.mrb[0].mxu0 %v670
    %v835 = vpop.f32.mrb[0].mxu0
    %v836 = vadd.f32 %v692, %v835
    %v837 = vpop.f32.mrb[0].mxu0
    %838 = vdwg.mxu0
    %v839 = vmax.f32 %v761, 0.0
    %v840 = vmax.f32 %v766, 0.0
    %v841 = vmax.f32 %v771, 0.0
    %v842 = vmax.f32 %v776, 0.0
    %v843 = vmax.f32 %v781, 0.0
    %v844 = vmax.f32 %v786, 0.0
    %v845 = vmax.f32 %v791, 0.0
    %v846 = vmax.f32 %v796, 0.0
    %v847 = vmax.f32 %v801, 0.0
    %v848 = vmax.f32 %v806, 0.0
    %v849 = vmax.f32 %v811, 0.0
    %v850 = vmax.f32 %v816, 0.0
    %v851 = vmax.f32 %v821, 0.0
    %v852 = vmax.f32 %v826, 0.0
    %v853 = vmax.f32 %v831, 0.0
    %v854 = vmax.f32 %v836, 0.0
    %v855 = vld [vmem:[%s6] sm:$0xff]
    %v856 = vld [vmem:[%s6 + $0x8] sm:$0xff]
    %v857 = vld [vmem:[%s6 + $0x10] sm:$0xff]
    %v858 = vld [vmem:[%s6 + $0x18] sm:$0xff]
    %v859 = vld [vmem:[%s6 + $0x20] sm:$0xff]
    %v860 = vld [vmem:[%s6 + $0x28] sm:$0xff]
    %v861 = vld [vmem:[%s6 + $0x30] sm:$0xff]
    %v862 = vld [vmem:[%s6 + $0x38] sm:$0xff]
    %v863 = vld [vmem:[%s6 + $0x40] sm:$0xff]
    %v864 = vld [vmem:[%s6 + $0x48] sm:$0xff]
    %v865 = vld [vmem:[%s6 + $0x50] sm:$0xff]
    %v866 = vld [vmem:[%s6 + $0x58] sm:$0xff]
    %v867 = vld [vmem:[%s6 + $0x60] sm:$0xff]
    %v868 = vld [vmem:[%s6 + $0x68] sm:$0xff]
    %v869 = vld [vmem:[%s6 + $0x70] sm:$0xff]
    %v870 = vld [vmem:[%s6 + $0x78] sm:$0xff]
    %v871 = vld [vmem:[%s7] sm:$0x1]
    %v873 = vlaneseq
    %v874 = vshrl.u32 %v873, 7
    %v875 = vsub.s32 0, %v874
    %v876 = vrot.slane %v871, %v875
    %878 = vmatprep.subr.mxu0 0.0
    %879 = vmatpush1.msra.mxu0 %v855
    %880 = vmatprep.subr.mxu0 0.0
    %881 = vmatpush1.msra.mxu0 %v856
    %882 = vmatprep.subr.mxu0 0.0
    %883 = vmatpush1.msra.mxu0 %v857
    %884 = vmatprep.subr.mxu0 0.0
    %885 = vmatpush1.msra.mxu0 %v858
    %886 = vmatprep.subr.mxu0 0.0
    %887 = vmatpush1.msra.mxu0 %v859
    %888 = vmatprep.subr.mxu0 0.0
    %889 = vmatpush1.msra.mxu0 %v860
    %890 = vmatprep.subr.mxu0 0.0
    %891 = vmatpush1.msra.mxu0 %v861
    %892 = vmatprep.subr.mxu0 0.0
    %893 = vmatpush1.msra.mxu0 %v862
    %894 = vmatprep.subr.mxu0 0.0
    %895 = vmatpush1.msra.mxu0 %v863
    %896 = vmatprep.subr.mxu0 0.0
    %897 = vmatpush1.msra.mxu0 %v864
    %898 = vmatprep.subr.mxu0 0.0
    %899 = vmatpush1.msra.mxu0 %v865
    %900 = vmatprep.subr.mxu0 0.0
    %901 = vmatpush1.msra.mxu0 %v866
    %902 = vmatprep.subr.mxu0 0.0
    %903 = vmatpush1.msra.mxu0 %v867
    %904 = vmatprep.subr.mxu0 0.0
    %905 = vmatpush1.msra.mxu0 %v868
    %906 = vmatprep.subr.mxu0 0.0
    %907 = vmatpush1.msra.mxu0 %v869
    %908 = vmatprep.subr.mxu0 0.0
    %909 = vmatpush1.msra.mxu0 %v870
    %910 = vmatprep.subr.mxu0 0.0
    %911 = vmatpush1.msra.mxu0 0.0
    %912 = vmatprep.subr.mxu0 0.0
    %913 = vmatpush1.msra.mxu0 0.0
    %914 = vmatprep.subr.mxu0 0.0
    %915 = vmatpush1.msra.mxu0 0.0
    %916 = vmatprep.subr.mxu0 0.0
    %917 = vmatpush1.msra.mxu0 0.0
    %918 = vmatprep.subr.mxu0 0.0
    %919 = vmatpush1.msra.mxu0 0.0
    %920 = vmatprep.subr.mxu0 0.0
    %921 = vmatpush1.msra.mxu0 0.0
    %922 = vmatprep.subr.mxu0 0.0
    %923 = vmatpush1.msra.mxu0 0.0
    %924 = vmatprep.subr.mxu0 0.0
    %925 = vmatpush1.msra.mxu0 0.0
    %926 = vmatprep.subr.mxu0 0.0
    %927 = vmatpush1.msra.mxu0 0.0
    %928 = vmatprep.subr.mxu0 0.0
    %929 = vmatpush1.msra.mxu0 0.0
    %930 = vmatprep.subr.mxu0 0.0
    %931 = vmatpush1.msra.mxu0 0.0
    %932 = vmatprep.subr.mxu0 0.0
    %933 = vmatpush1.msra.mxu0 0.0
    %934 = vmatprep.subr.mxu0 0.0
    %935 = vmatpush1.msra.mxu0 0.0
    %936 = vmatprep.subr.mxu0 0.0
    %937 = vmatpush1.msra.mxu0 0.0
    %938 = vmatprep.subr.mxu0 0.0
    %939 = vmatpush1.msra.mxu0 0.0
    %940 = vmatprep.subr.mxu0 0.0
    %941 = vmatpush1.msra.mxu0 0.0
    %942 = vmatprep.mubr.f32.mxu0 0.0
    %943 = vmatmul.mubr.f32.gmra.mrb[0].mxu0 %v839
    %v944 = vpop.f32.mrb[0].mxu0
    %v945 = vadd.f32 %v876, %v944
    %v946 = vpop.f32.mrb[0].mxu0
    %947 = vmatprep.mubr.f32.mxu0 0.0
    %948 = vmatmul.mubr.f32.gmra.mrb[0].mxu0 %v840
    %v949 = vpop.f32.mrb[0].mxu0
    %v950 = vadd.f32 %v876, %v949
    %v951 = vpop.f32.mrb[0].mxu0
    %952 = vmatprep.mubr.f32.mxu0 0.0
    %953 = vmatmul.mubr.f32.gmra.mrb[0].mxu0 %v841
    %v954 = vpop.f32.mrb[0].mxu0
    %v955 = vadd.f32 %v876, %v954
    %v956 = vpop.f32.mrb[0].mxu0
    %957 = vmatprep.mubr.f32.mxu0 0.0
    %958 = vmatmul.mubr.f32.gmra.mrb[0].mxu0 %v842
    %v959 = vpop.f32.mrb[0].mxu0
    %v960 = vadd.f32 %v876, %v959
    %v961 = vpop.f32.mrb[0].mxu0
    %962 = vmatprep.mubr.f32.mxu0 0.0
    %963 = vmatmul.mubr.f32.gmra.mrb[0].mxu0 %v843
    %v964 = vpop.f32.mrb[0].mxu0
    %v965 = vadd.f32 %v876, %v964
    %v966 = vpop.f32.mrb[0].mxu0
    %967 = vmatprep.mubr.f32.mxu0 0.0
    %968 = vmatmul.mubr.f32.gmra.mrb[0].mxu0 %v844
    %v969 = vpop.f32.mrb[0].mxu0
    %v970 = vadd.f32 %v876, %v969
    %v971 = vpop.f32.mrb[0].mxu0
    %972 = vmatprep.mubr.f32.mxu0 0.0
    %973 = vmatmul.mubr.f32.gmra.mrb[0].mxu0 %v845
    %v974 = vpop.f32.mrb[0].mxu0
    %v975 = vadd.f32 %v876, %v974
    %v976 = vpop.f32.mrb[0].mxu0
    %977 = vmatprep.mubr.f32.mxu0 0.0
    %978 = vmatmul.mubr.f32.gmra.mrb[0].mxu0 %v846
    %v979 = vpop.f32.mrb[0].mxu0
    %v980 = vadd.f32 %v876, %v979
    %v981 = vpop.f32.mrb[0].mxu0
    %982 = vmatprep.mubr.f32.mxu0 0.0
    %983 = vmatmul.mubr.f32.gmra.mrb[0].mxu0 %v847
    %v984 = vpop.f32.mrb[0].mxu0
    %v985 = vadd.f32 %v876, %v984
    %v986 = vpop.f32.mrb[0].mxu0
    %987 = vmatprep.mubr.f32.mxu0 0.0
    %988 = vmatmul.mubr.f32.gmra.mrb[0].mxu0 %v848
    %v989 = vpop.f32.mrb[0].mxu0
    %v990 = vadd.f32 %v876, %v989
    %v991 = vpop.f32.mrb[0].mxu0
    %992 = vmatprep.mubr.f32.mxu0 0.0
    %993 = vmatmul.mubr.f32.gmra.mrb[0].mxu0 %v849
    %v994 = vpop.f32.mrb[0].mxu0
    %v995 = vadd.f32 %v876, %v994
    %v996 = vpop.f32.mrb[0].mxu0
    %997 = vmatprep.mubr.f32.mxu0 0.0
    %998 = vmatmul.mubr.f32.gmra.mrb[0].mxu0 %v850
    %v999 = vpop.f32.mrb[0].mxu0
    %v1000 = vadd.f32 %v876, %v999
    %v1001 = vpop.f32.mrb[0].mxu0
    %1002 = vmatprep.mubr.f32.mxu0 0.0
    %1003 = vmatmul.mubr.f32.gmra.mrb[0].mxu0 %v851
    %v1004 = vpop.f32.mrb[0].mxu0
    %v1005 = vadd.f32 %v876, %v1004
    %v1006 = vpop.f32.mrb[0].mxu0
    %1007 = vmatprep.mubr.f32.mxu0 0.0
    %1008 = vmatmul.mubr.f32.gmra.mrb[0].mxu0 %v852
    %v1009 = vpop.f32.mrb[0].mxu0
    %v1010 = vadd.f32 %v876, %v1009
    %v1011 = vpop.f32.mrb[0].mxu0
    %1012 = vmatprep.mubr.f32.mxu0 0.0
    %1013 = vmatmul.mubr.f32.gmra.mrb[0].mxu0 %v853
    %v1014 = vpop.f32.mrb[0].mxu0
    %v1015 = vadd.f32 %v876, %v1014
    %v1016 = vpop.f32.mrb[0].mxu0
    %1017 = vmatprep.mubr.f32.mxu0 0.0
    %1018 = vmatmul.mubr.f32.gmra.mrb[0].mxu0 %v854
    %v1019 = vpop.f32.mrb[0].mxu0
    %v1020 = vadd.f32 %v876, %v1019
    %v1021 = vpop.f32.mrb[0].mxu0
    %1022 = vdwg.mxu0
    %v1023 = vmax.f32 %v945, 0.0
    %v1024 = vmax.f32 %v950, 0.0
    %v1025 = vmax.f32 %v955, 0.0
    %v1026 = vmax.f32 %v960, 0.0
    %v1027 = vmax.f32 %v965, 0.0
    %v1028 = vmax.f32 %v970, 0.0
    %v1029 = vmax.f32 %v975, 0.0
    %v1030 = vmax.f32 %v980, 0.0
    %v1031 = vmax.f32 %v985, 0.0
    %v1032 = vmax.f32 %v990, 0.0
    %v1033 = vmax.f32 %v995, 0.0
    %v1034 = vmax.f32 %v1000, 0.0
    %v1035 = vmax.f32 %v1005, 0.0
    %v1036 = vmax.f32 %v1010, 0.0
    %v1037 = vmax.f32 %v1015, 0.0
    %v1038 = vmax.f32 %v1020, 0.0
    %v1039 = vld [vmem:[%s8] sm:$0x1]
    %v1041 = vlaneseq
    %v1042 = vshrl.u32 %v1041, 7
    %v1043 = vsub.s32 0, %v1042
    %v1044 = vrot.slane %v1039, %v1043
    %v1046 = vmul.f32 %v1023, %v1044
    %v1047 = vmul.f32 %v1024, %v1044
    %v1048 = vmul.f32 %v1025, %v1044
    %v1049 = vmul.f32 %v1026, %v1044
    %v1050 = vmul.f32 %v1027, %v1044
    %v1051 = vmul.f32 %v1028, %v1044
    %v1052 = vmul.f32 %v1029, %v1044
    %v1053 = vmul.f32 %v1030, %v1044
    %v1054 = vmul.f32 %v1031, %v1044
    %v1055 = vmul.f32 %v1032, %v1044
    %v1056 = vmul.f32 %v1033, %v1044
    %v1057 = vmul.f32 %v1034, %v1044
    %v1058 = vmul.f32 %v1035, %v1044
    %v1059 = vmul.f32 %v1036, %v1044
    %v1060 = vmul.f32 %v1037, %v1044
    %v1061 = vmul.f32 %v1038, %v1044
    %v1062 = vld [vmem:[%s9] sm:$0x1]
    %v1064 = vlaneseq
    %v1065 = vshrl.u32 %v1064, 7
    %v1066 = vsub.s32 0, %v1065
    %v1067 = vrot.slane %v1062, %v1066
    %v1069 = vadd.f32 %v1046, %v1067
    %v1070 = vadd.f32 %v1047, %v1067
    %v1071 = vadd.f32 %v1048, %v1067
    %v1072 = vadd.f32 %v1049, %v1067
    %v1073 = vadd.f32 %v1050, %v1067
    %v1074 = vadd.f32 %v1051, %v1067
    %v1075 = vadd.f32 %v1052, %v1067
    %v1076 = vadd.f32 %v1053, %v1067
    %v1077 = vadd.f32 %v1054, %v1067
    %v1078 = vadd.f32 %v1055, %v1067
    %v1079 = vadd.f32 %v1056, %v1067
    %v1080 = vadd.f32 %v1057, %v1067
    %v1081 = vadd.f32 %v1058, %v1067
    %v1082 = vadd.f32 %v1059, %v1067
    %v1083 = vadd.f32 %v1060, %v1067
    %v1084 = vadd.f32 %v1061, %v1067
    %1085 = vst [vmem:[%s10] sm:$0xff] %v1069
    %1086 = vst [vmem:[%s10 + $0x8] sm:$0xff] %v1070
    %1087 = vst [vmem:[%s10 + $0x10] sm:$0xff] %v1071
    %1088 = vst [vmem:[%s10 + $0x18] sm:$0xff] %v1072
    %1089 = vst [vmem:[%s10 + $0x20] sm:$0xff] %v1073
    %1090 = vst [vmem:[%s10 + $0x28] sm:$0xff] %v1074
    %1091 = vst [vmem:[%s10 + $0x30] sm:$0xff] %v1075
    %1092 = vst [vmem:[%s10 + $0x38] sm:$0xff] %v1076
    %1093 = vst [vmem:[%s10 + $0x40] sm:$0xff] %v1077
    %1094 = vst [vmem:[%s10 + $0x48] sm:$0xff] %v1078
    %1095 = vst [vmem:[%s10 + $0x50] sm:$0xff] %v1079
    %1096 = vst [vmem:[%s10 + $0x58] sm:$0xff] %v1080
    %1097 = vst [vmem:[%s10 + $0x60] sm:$0xff] %v1081
    %1098 = vst [vmem:[%s10 + $0x68] sm:$0xff] %v1082
    %1099 = vst [vmem:[%s10 + $0x70] sm:$0xff] %v1083
    %1100 = vst [vmem:[%s10 + $0x78] sm:$0xff] %v1084
  $region49: #{gin_forward.4} parent=0 // pred_fallthru
    _
  // Predicated region
  $region50: #{gin_forward.4} parent=0 // pred_check
    _
  $region51: #{gin_forward.4} parent=0 // pred_check_branch
    %1102 = sbr.rel (0) target = $region53
  $region52: #{gin_forward.4} parent=0 // pred_region
    _
  $region53: #{gin_forward.4} parent=0 // pred_fallthru
    _
  // Predicated region
  $region54: #{gin_forward.4} parent=0 // pred_check
    _
  $region55: #{gin_forward.4} parent=0 // pred_check_branch
    %1104 = sbr.rel (0) target = $region57
  $region56: #{gin_forward.4} parent=0 // pred_region
    _
  $region57: #{gin_forward.4} parent=0 // pred_fallthru
    _

</llo_original>
